<compile_context>
chip_gen: v7x
topology: tpu7x:2x2x1
jax: 0.10.0
libtpu: 0.0.40
codegen_flags: <defaults>
</compile_context>

<pallas_src>
import functools

import jax
import jax.numpy as jnp
from jax.experimental import pallas as pl
from jax.experimental.pallas import tpu as pltpu

_LANE = 128
_NEG_INF = -1e30  # plain Python float: must NOT be a jnp array (kernel would capture it)


def _round_up(n, m=_LANE):
    return ((n + m - 1) // m) * m


def _attn_decoder_kernel(max_length, output_size,
                         # ---- inputs ----
                         tok_ref,        # SMEM (1,)        int32  token index
                         emb_hbm,        # HBM  (V, Hp)     f32    embedding table (stays in HBM)
                         h_ref,          # VMEM (1, Hp)     f32    previous hidden state
                         c_ref,          # VMEM (1, Hp)     f32    previous cell state
                         enc_ref,        # VMEM (Lp, Hp)    f32    encoder outputs (zero padded)
                         wattn_x_ref,    # VMEM (Hp, Lp)    f32    attn weights for embedded half
                         wattn_h_ref,    # VMEM (Hp, Lp)    f32    attn weights for hidden half
                         battn_ref,      # VMEM (1, Lp)     f32
                         wcomb_x_ref,    # VMEM (Hp, Hp)    f32    attn_combine weights (embedded half)
                         wcomb_a_ref,    # VMEM (Hp, Hp)    f32    attn_combine weights (context half)
                         bcomb_ref,      # VMEM (1, Hp)     f32
                         wih_ref,        # VMEM (Hp, 4Hp)   f32    LSTM input->gates (gate slabs lane aligned)
                         whh_ref,        # VMEM (Hp, 4Hp)   f32    LSTM hidden->gates
                         blstm_ref,      # VMEM (1, 4Hp)    f32    b_ih + b_hh
                         wout_ref,       # VMEM (Hp, Vp)    f32    output projection
                         bout_ref,       # VMEM (1, Vp)     f32
                         # ---- outputs ----
                         logp_ref,       # VMEM (1, Vp)     log-softmax over vocab
                         hout_ref,       # VMEM (1, Hp)     new hidden state (== LSTM output)
                         cout_ref,       # VMEM (1, Hp)     new cell state
                         attnw_ref,      # VMEM (1, Lp)     attention weights
                         # ---- scratch ----
                         emb_buf,        # VMEM (1, Hp)
                         emb_sem):       # DMA semaphore
    Hp = h_ref.shape[-1]

    # 1) Embedding lookup: DMA a single row from HBM (whole table never enters VMEM).
    tok = tok_ref[0]
    cp = pltpu.make_async_copy(emb_hbm.at[pl.ds(tok, 1), :], emb_buf, emb_sem)
    cp.start()

    h = h_ref[...]
    c = c_ref[...]

    # Hidden-dependent half of the attention logits overlaps the embedding DMA.
    a_logits_h = jnp.dot(h, wattn_h_ref[...], preferred_element_type=jnp.float32)

    cp.wait()
    x = emb_buf[...]                      # (1, Hp); dropout == identity at inference

    # 2) attn_weights = softmax(attn(cat(embedded, hidden))) over valid lanes.
    a_logits = (a_logits_h
                + jnp.dot(x, wattn_x_ref[...], preferred_element_type=jnp.float32)
                + battn_ref[...])                                   # (1, Lp)
    lane = jax.lax.broadcasted_iota(jnp.int32, a_logits.shape, 1)
    a_logits = jnp.where(lane < max_length, a_logits, _NEG_INF)
    a_max = jnp.max(a_logits, axis=-1, keepdims=True)
    a_exp = jnp.exp(a_logits - a_max)
    attn_w = a_exp * pl.reciprocal(jnp.sum(a_exp, axis=-1, keepdims=True))  # (1, Lp)
    attnw_ref[...] = attn_w

    # 3) attn_applied = attn_weights @ encoder_outputs  -> (1, Hp)
    attn_applied = jnp.dot(attn_w, enc_ref[...], preferred_element_type=jnp.float32)

    # 4) attn_combine(cat(embedded, attn_applied)) + ReLU -> LSTM input.
    lstm_x = jnp.maximum(
        jnp.dot(x, wcomb_x_ref[...], preferred_element_type=jnp.float32)
        + jnp.dot(attn_applied, wcomb_a_ref[...], preferred_element_type=jnp.float32)
        + bcomb_ref[...],
        0.0)                                                        # (1, Hp)

    # 5) Single LSTM cell step; gates packed [i|f|g|o], each a 128-aligned slab.
    gates = (jnp.dot(lstm_x, wih_ref[...], preferred_element_type=jnp.float32)
             + jnp.dot(h, whh_ref[...], preferred_element_type=jnp.float32)
             + blstm_ref[...])                                      # (1, 4Hp)
    i_g = jax.nn.sigmoid(gates[:, 0 * Hp:1 * Hp])
    f_g = jax.nn.sigmoid(gates[:, 1 * Hp:2 * Hp])
    g_g = jnp.tanh(gates[:, 2 * Hp:3 * Hp])
    o_g = jax.nn.sigmoid(gates[:, 3 * Hp:4 * Hp])
    c_new = f_g * c + i_g * g_g
    h_new = o_g * jnp.tanh(c_new)
    hout_ref[...] = h_new
    cout_ref[...] = c_new

    # 6) output = log_softmax(out(h_new)) over the valid vocab lanes.
    logits = (jnp.dot(h_new, wout_ref[...], preferred_element_type=jnp.float32)
              + bout_ref[...])                                      # (1, Vp)
    vlane = jax.lax.broadcasted_iota(jnp.int32, logits.shape, 1)
    logits = jnp.where(vlane < output_size, logits, _NEG_INF)
    l_max = jnp.max(logits, axis=-1, keepdims=True)
    lse = l_max + jnp.log(jnp.sum(jnp.exp(logits - l_max), axis=-1, keepdims=True))
    logp_ref[...] = logits - lse


def prepare_attn_decoder_params(raw, hidden_size, max_length, output_size,
                                dtype=jnp.float32):
    """One-time padding / transposition of the PyTorch-layout parameters.

    Called once at model init (NOT per decode step): all transposes, casts and
    the b_ih + b_hh combine happen here, and every feature dim is zero-padded
    to a lane-aligned multiple of 128.
    """
    H, L, V = hidden_size, max_length, output_size
    Hp, Lp, Vp = _round_up(H), _round_up(L), _round_up(V)

    emb = jnp.zeros((V, Hp), dtype).at[:, :H].set(raw["embedding"].astype(dtype))

    w_attn = raw["w_attn"].astype(dtype)          # (L, 2H), input = [embedded | hidden]
    w_attn_x_t = jnp.zeros((Hp, Lp), dtype).at[:H, :L].set(w_attn[:, :H].T)
    w_attn_h_t = jnp.zeros((Hp, Lp), dtype).at[:H, :L].set(w_attn[:, H:2 * H].T)
    b_attn = jnp.zeros((1, Lp), dtype).at[0, :L].set(raw["b_attn"].astype(dtype))

    w_comb = raw["w_comb"].astype(dtype)          # (H, 2H), input = [embedded | context]
    w_comb_x_t = jnp.zeros((Hp, Hp), dtype).at[:H, :H].set(w_comb[:, :H].T)
    w_comb_a_t = jnp.zeros((Hp, Hp), dtype).at[:H, :H].set(w_comb[:, H:2 * H].T)
    b_comb = jnp.zeros((1, Hp), dtype).at[0, :H].set(raw["b_comb"].astype(dtype))

    w_ih = raw["w_ih"].astype(dtype)              # (4H, H), gate order [i|f|g|o]
    w_hh = raw["w_hh"].astype(dtype)
    b_lstm_full = (raw["b_ih"] + raw["b_hh"]).astype(dtype)
    w_ih_t = jnp.zeros((Hp, 4 * Hp), dtype)
    w_hh_t = jnp.zeros((Hp, 4 * Hp), dtype)
    b_lstm = jnp.zeros((1, 4 * Hp), dtype)
    for k in range(4):                            # each gate -> its own 128-aligned slab
        w_ih_t = w_ih_t.at[:H, k * Hp:k * Hp + H].set(w_ih[k * H:(k + 1) * H, :].T)
        w_hh_t = w_hh_t.at[:H, k * Hp:k * Hp + H].set(w_hh[k * H:(k + 1) * H, :].T)
        b_lstm = b_lstm.at[0, k * Hp:k * Hp + H].set(b_lstm_full[k * H:(k + 1) * H])

    w_out_t = jnp.zeros((Hp, Vp), dtype).at[:H, :V].set(raw["w_out"].astype(dtype).T)
    b_out = jnp.zeros((1, Vp), dtype).at[0, :V].set(raw["b_out"].astype(dtype))

    return dict(emb=emb,
                w_attn_x_t=w_attn_x_t, w_attn_h_t=w_attn_h_t, b_attn=b_attn,
                w_comb_x_t=w_comb_x_t, w_comb_a_t=w_comb_a_t, b_comb=b_comb,
                w_ih_t=w_ih_t, w_hh_t=w_hh_t, b_lstm=b_lstm,
                w_out_t=w_out_t, b_out=b_out)


@functools.partial(jax.jit, static_argnames=("hidden_size", "max_length", "output_size"))
def attn_decoder_forward(token, h0, c0, encoder_outputs, params, *,
                         hidden_size, max_length, output_size):
    """Pallas-backed AttnDecoderRNN.forward(input, hidden, encoder_outputs).

    token           : () or (1,) int32
    h0, c0          : (layers=1, 1, H) f32
    encoder_outputs : (max_length, H)  f32
    params          : dict from prepare_attn_decoder_params (prepared once)
    Returns (log_probs (1, V), (h_n, c_n) each (1, 1, H), attn_weights (1, max_length)).
    """
    H, L, V = hidden_size, max_length, output_size
    Hp, Lp, Vp = _round_up(H), _round_up(L), _round_up(V)

    tok = jnp.reshape(token, (1,)).astype(jnp.int32)
    h_pad = jnp.zeros((1, Hp), jnp.float32).at[:, :H].set(
        jnp.reshape(h0, (1, H)).astype(jnp.float32))
    c_pad = jnp.zeros((1, Hp), jnp.float32).at[:, :H].set(
        jnp.reshape(c0, (1, H)).astype(jnp.float32))
    enc_pad = jnp.zeros((Lp, Hp), jnp.float32).at[:L, :H].set(
        encoder_outputs.astype(jnp.float32))

    kernel = functools.partial(_attn_decoder_kernel, L, V)

    logp, h_new, c_new, attn_w = pl.pallas_call(
        kernel,
        out_shape=(
            jax.ShapeDtypeStruct((1, Vp), jnp.float32),
            jax.ShapeDtypeStruct((1, Hp), jnp.float32),
            jax.ShapeDtypeStruct((1, Hp), jnp.float32),
            jax.ShapeDtypeStruct((1, Lp), jnp.float32),
        ),
        in_specs=[
            pl.BlockSpec(memory_space=pltpu.MemorySpace.SMEM),   # token index
            pl.BlockSpec(memory_space=pl.ANY),                   # embedding table (HBM)
            pl.BlockSpec(memory_space=pltpu.MemorySpace.VMEM),   # h0
            pl.BlockSpec(memory_space=pltpu.MemorySpace.VMEM),   # c0
            pl.BlockSpec(memory_space=pltpu.MemorySpace.VMEM),   # encoder outputs
            pl.BlockSpec(memory_space=pltpu.MemorySpace.VMEM),   # W_attn (embedded half)^T
            pl.BlockSpec(memory_space=pltpu.MemorySpace.VMEM),   # W_attn (hidden half)^T
            pl.BlockSpec(memory_space=pltpu.MemorySpace.VMEM),   # b_attn
            pl.BlockSpec(memory_space=pltpu.MemorySpace.VMEM),   # W_combine (embedded half)^T
            pl.BlockSpec(memory_space=pltpu.MemorySpace.VMEM),   # W_combine (context half)^T
            pl.BlockSpec(memory_space=pltpu.MemorySpace.VMEM),   # b_combine
            pl.BlockSpec(memory_space=pltpu.MemorySpace.VMEM),   # W_ih^T
            pl.BlockSpec(memory_space=pltpu.MemorySpace.VMEM),   # W_hh^T
            pl.BlockSpec(memory_space=pltpu.MemorySpace.VMEM),   # b_lstm
            pl.BlockSpec(memory_space=pltpu.MemorySpace.VMEM),   # W_out^T
            pl.BlockSpec(memory_space=pltpu.MemorySpace.VMEM),   # b_out
        ],
        out_specs=(
            pl.BlockSpec(memory_space=pltpu.MemorySpace.VMEM),
            pl.BlockSpec(memory_space=pltpu.MemorySpace.VMEM),
            pl.BlockSpec(memory_space=pltpu.MemorySpace.VMEM),
            pl.BlockSpec(memory_space=pltpu.MemorySpace.VMEM),
        ),
        scratch_shapes=[
            pltpu.VMEM((1, Hp), jnp.float32),    # embedded row buffer
            pltpu.SemaphoreType.DMA(()),         # embedding-row DMA semaphore
        ],
    )(tok, params["emb"], h_pad, c_pad, enc_pad,
      params["w_attn_x_t"], params["w_attn_h_t"], params["b_attn"],
      params["w_comb_x_t"], params["w_comb_a_t"], params["b_comb"],
      params["w_ih_t"], params["w_hh_t"], params["b_lstm"],
      params["w_out_t"], params["b_out"])

    log_probs = logp[:, :V]                               # (1, V)
    attn_weights = attn_w[:, :L]                          # (1, L)
    h_n = h_new[:, :H].reshape(1, 1, H)
    c_n = c_new[:, :H].reshape(1, 1, H)
    return log_probs, (h_n, c_n), attn_weights


def _reference_forward(token, h0, c0, encoder_outputs, raw):
    """Pure-JAX reference mirroring the PyTorch AttnDecoderRNN forward (eval mode)."""
    H = h0.shape[-1]
    x = raw["embedding"][jnp.reshape(token, ())]                      # (H,)
    h = h0[0, 0]
    c = c0[0, 0]
    attn_in = jnp.concatenate([x, h])                                 # (2H,)
    attn_w = jax.nn.softmax(attn_in @ raw["w_attn"].T + raw["b_attn"])
    attn_applied = attn_w @ encoder_outputs                           # (H,)
    comb_in = jnp.concatenate([x, attn_applied])
    lstm_x = jax.nn.relu(comb_in @ raw["w_comb"].T + raw["b_comb"])
    gates = lstm_x @ raw["w_ih"].T + raw["b_ih"] + h @ raw["w_hh"].T + raw["b_hh"]
    i_g = jax.nn.sigmoid(gates[0 * H:1 * H])
    f_g = jax.nn.sigmoid(gates[1 * H:2 * H])
    g_g = jnp.tanh(gates[2 * H:3 * H])
    o_g = jax.nn.sigmoid(gates[3 * H:4 * H])
    c_new = f_g * c + i_g * g_g
    h_new = o_g * jnp.tanh(c_new)
    logp = jax.nn.log_softmax(h_new @ raw["w_out"].T + raw["b_out"])
    return (logp.reshape(1, -1),
            (h_new.reshape(1, 1, H), c_new.reshape(1, 1, H)),
            attn_w.reshape(1, -1))


if __name__ == "__main__":
    # Small shapes (module defaults are hidden=250, max_length=100); deliberately
    # NOT multiples of 128 to exercise the lane-padding path.
    hidden_size = 48
    output_size = 40      # vocab size
    max_length = 24

    key = jax.random.PRNGKey(0)
    ks = jax.random.split(key, 14)
    scale = 1.0 / float(hidden_size) ** 0.5

    def u(k, shape):
        return jax.random.uniform(k, shape, jnp.float32, -scale, scale)

    raw = {
        "embedding": jax.random.normal(ks[0], (output_size, hidden_size), jnp.float32),
        "w_attn":    u(ks[1], (max_length, 2 * hidden_size)),
        "b_attn":    u(ks[2], (max_length,)),
        "w_comb":    u(ks[3], (hidden_size, 2 * hidden_size)),
        "b_comb":    u(ks[4], (hidden_size,)),
        "w_ih":      u(ks[5], (4 * hidden_size, hidden_size)),
        "w_hh":      u(ks[6], (4 * hidden_size, hidden_size)),
        "b_ih":      u(ks[7], (4 * hidden_size,)),
        "b_hh":      u(ks[8], (4 * hidden_size,)),
        "w_out":     u(ks[9], (output_size, hidden_size)),
        "b_out":     u(ks[10], (output_size,)),
    }

    # One-time weight preparation (hoisted out of the per-step jitted forward).
    params = prepare_attn_decoder_params(raw, hidden_size, max_length, output_size)

    # initHidden() is zeros; use small random states to exercise the full cell math.
    h0 = jax.random.normal(ks[11], (1, 1, hidden_size), jnp.float32) * 0.1
    c0 = jax.random.normal(ks[12], (1, 1, hidden_size), jnp.float32) * 0.1
    encoder_outputs = jax.random.normal(ks[13], (max_length, hidden_size), jnp.float32) * 0.1
    token = jax.random.randint(jax.random.PRNGKey(42), (1,), 0, output_size, jnp.int32)

    log_probs, (h_n, c_n), attn_weights = attn_decoder_forward(
        token, h0, c0, encoder_outputs, params,
        hidden_size=hidden_size, max_length=max_length, output_size=output_size)
    jax.block_until_ready((log_probs, h_n, c_n, attn_weights))

    ref_logp, (ref_h, ref_c), ref_aw = _reference_forward(
        token, h0, c0, encoder_outputs, raw)

    assert log_probs.shape == (1, output_size)
    assert attn_weights.shape == (1, max_length)
    assert h_n.shape == (1, 1, hidden_size) and c_n.shape == (1, 1, hidden_size)
    assert jnp.allclose(attn_weights, ref_aw, atol=1e-5, rtol=1e-4)
    assert jnp.allclose(h_n, ref_h, atol=1e-5, rtol=1e-4)
    assert jnp.allclose(c_n, ref_c, atol=1e-5, rtol=1e-4)
    assert jnp.allclose(log_probs, ref_logp, atol=1e-5, rtol=1e-4)

    print("KERNEL_OK")
</pallas_src>

<mosaic_0001>
module attributes {stable_mosaic.version = 11 : i64} {
  func.func @_attn_decoder_kernel(%arg0: memref<1xi32, #tpu.memory_space<smem>>, %arg1: memref<40x128xf32, #tpu.memory_space<any>>, %arg2: memref<1x128xf32, #tpu.memory_space<vmem>>, %arg3: memref<1x128xf32, #tpu.memory_space<vmem>>, %arg4: memref<128x128xf32, #tpu.memory_space<vmem>>, %arg5: memref<128x128xf32, #tpu.memory_space<vmem>>, %arg6: memref<128x128xf32, #tpu.memory_space<vmem>>, %arg7: memref<1x128xf32, #tpu.memory_space<vmem>>, %arg8: memref<128x128xf32, #tpu.memory_space<vmem>>, %arg9: memref<128x128xf32, #tpu.memory_space<vmem>>, %arg10: memref<1x128xf32, #tpu.memory_space<vmem>>, %arg11: memref<128x512xf32, #tpu.memory_space<vmem>>, %arg12: memref<128x512xf32, #tpu.memory_space<vmem>>, %arg13: memref<1x512xf32, #tpu.memory_space<vmem>>, %arg14: memref<128x128xf32, #tpu.memory_space<vmem>>, %arg15: memref<1x128xf32, #tpu.memory_space<vmem>>, %arg16: memref<1x128xf32, #tpu.memory_space<vmem>>, %arg17: memref<1x128xf32, #tpu.memory_space<vmem>>, %arg18: memref<1x128xf32, #tpu.memory_space<vmem>>, %arg19: memref<1x128xf32, #tpu.memory_space<vmem>>, %arg20: memref<1x128xf32, #tpu.memory_space<vmem>>, %arg21: memref<!tpu.dma_semaphore, #tpu.memory_space<semaphore_mem>>) attributes {dimension_semantics = [], scalar_prefetch = 0 : i64, scratch_operands = 2 : i64, tpu.core_type = #tpu.core_type<tc>} {
    %c0 = arith.constant 0 : index
    %0 = memref.load %arg0[%c0] : memref<1xi32, #tpu.memory_space<smem>>
    %c0_i32 = arith.constant 0 : i32
    %1 = tpu.memref_slice %arg1[%0, %c0_i32] : memref<40x128xf32, #tpu.memory_space<any>> -> memref<1x128xf32, #tpu.memory_space<any>>
    tpu.enqueue_dma source(%1 : memref<1x128xf32, #tpu.memory_space<any>>) target(%arg20 : memref<1x128xf32, #tpu.memory_space<vmem>>) target_semaphore(%arg21 : memref<!tpu.dma_semaphore, #tpu.memory_space<semaphore_mem>>)
    %c0_0 = arith.constant 0 : index
    %c0_1 = arith.constant 0 : index
    %2 = vector.load %arg2[%c0_0, %c0_1] : memref<1x128xf32, #tpu.memory_space<vmem>>, vector<1x128xf32>
    %c0_2 = arith.constant 0 : index
    %c0_3 = arith.constant 0 : index
    %3 = vector.load %arg3[%c0_2, %c0_3] : memref<1x128xf32, #tpu.memory_space<vmem>>, vector<1x128xf32>
    %c0_4 = arith.constant 0 : index
    %c0_5 = arith.constant 0 : index
    %4 = vector.load %arg6[%c0_4, %c0_5] : memref<128x128xf32, #tpu.memory_space<vmem>>, vector<128x128xf32>
    %cst = arith.constant dense<0.000000e+00> : vector<1x128xf32>
    %5 = tpu.matmul %2, %4, %cst {dimension_numbers = #tpu.dot_dimension_numbers<[1], [0], [0], [1], [0, 0, 1, 1], [], []>} : vector<1x128xf32>, vector<128x128xf32>, vector<1x128xf32> -> vector<1x128xf32>
    %c0_i32_6 = arith.constant 0 : i32
    %6 = tpu.memref_slice %arg1[%0, %c0_i32_6] : memref<40x128xf32, #tpu.memory_space<any>> -> memref<1x128xf32, #tpu.memory_space<any>>
    tpu.wait_dma2 semaphore(%arg21 : memref<!tpu.dma_semaphore, #tpu.memory_space<semaphore_mem>>) src(%6 : memref<1x128xf32, #tpu.memory_space<any>>) dst(%arg20 : memref<1x128xf32, #tpu.memory_space<vmem>>)
    %c0_7 = arith.constant 0 : index
    %c0_8 = arith.constant 0 : index
    %7 = vector.load %arg20[%c0_7, %c0_8] : memref<1x128xf32, #tpu.memory_space<vmem>>, vector<1x128xf32>
    %c0_9 = arith.constant 0 : index
    %c0_10 = arith.constant 0 : index
    %8 = vector.load %arg5[%c0_9, %c0_10] : memref<128x128xf32, #tpu.memory_space<vmem>>, vector<128x128xf32>
    %cst_11 = arith.constant dense<0.000000e+00> : vector<1x128xf32>
    %9 = tpu.matmul %7, %8, %cst_11 {dimension_numbers = #tpu.dot_dimension_numbers<[1], [0], [0], [1], [0, 0, 1, 1], [], []>} : vector<1x128xf32>, vector<128x128xf32>, vector<1x128xf32> -> vector<1x128xf32>
    %10 = arith.addf %5, %9 : vector<1x128xf32>
    %c0_12 = arith.constant 0 : index
    %c0_13 = arith.constant 0 : index
    %11 = vector.load %arg7[%c0_12, %c0_13] : memref<1x128xf32, #tpu.memory_space<vmem>>, vector<1x128xf32>
    %12 = arith.addf %10, %11 : vector<1x128xf32>
    %13 = tpu.iota {dimensions = array<i32: 1>} : vector<1x128xi32>
    %c24_i32 = arith.constant 24 : i32
    %14 = vector.broadcast %c24_i32 : i32 to vector<1x128xi32>
    %15 = arith.cmpi slt, %13, %14 : vector<1x128xi32>
    %cst_14 = arith.constant -1.000000e+30 : f32
    %16 = vector.broadcast %cst_14 : f32 to vector<1x128xf32>
    %17 = arith.select %15, %12, %16 : vector<1x128xi1>, vector<1x128xf32>
    %cst_15 = arith.constant dense<0xFF800000> : vector<1xf32>
    %18 = vector.multi_reduction <maximumf>, %17, %cst_15 [1] : vector<1x128xf32> to vector<1xf32>
    %19 = vector.shape_cast %18 : vector<1xf32> to vector<1x1xf32>
    %20 = vector.broadcast %19 : vector<1x1xf32> to vector<1x128xf32>
    %21 = arith.subf %17, %20 : vector<1x128xf32>
    %22 = math.exp %21 : vector<1x128xf32>
    %cst_16 = arith.constant dense<0.000000e+00> : vector<1xf32>
    %23 = vector.multi_reduction <add>, %22, %cst_16 [1] : vector<1x128xf32> to vector<1xf32>
    %24 = vector.shape_cast %23 : vector<1xf32> to vector<1x1xf32>
    %25 = tpu.reciprocal %24 : vector<1x1xf32> -> vector<1x1xf32>
    %26 = vector.broadcast %25 : vector<1x1xf32> to vector<1x128xf32>
    %27 = arith.mulf %22, %26 : vector<1x128xf32>
    %c0_17 = arith.constant 0 : index
    %c0_18 = arith.constant 0 : index
    %28 = vector.load %arg19[%c0_17, %c0_18] : memref<1x128xf32, #tpu.memory_space<vmem>>, vector<1x128xf32>
    tpu.vector_store %arg19[%c0_17, %c0_18], %27 {strides = array<i32>} : memref<1x128xf32, #tpu.memory_space<vmem>>, vector<1x128xf32>,
    %c0_19 = arith.constant 0 : index
    %c0_20 = arith.constant 0 : index
    %29 = vector.load %arg4[%c0_19, %c0_20] : memref<128x128xf32, #tpu.memory_space<vmem>>, vector<128x128xf32>
    %cst_21 = arith.constant dense<0.000000e+00> : vector<1x128xf32>
    %30 = tpu.matmul %27, %29, %cst_21 {dimension_numbers = #tpu.dot_dimension_numbers<[1], [0], [0], [1], [0, 0, 1, 1], [], []>} : vector<1x128xf32>, vector<128x128xf32>, vector<1x128xf32> -> vector<1x128xf32>
    %c0_22 = arith.constant 0 : index
    %c0_23 = arith.constant 0 : index
    %31 = vector.load %arg8[%c0_22, %c0_23] : memref<128x128xf32, #tpu.memory_space<vmem>>, vector<128x128xf32>
    %cst_24 = arith.constant dense<0.000000e+00> : vector<1x128xf32>
    %32 = tpu.matmul %7, %31, %cst_24 {dimension_numbers = #tpu.dot_dimension_numbers<[1], [0], [0], [1], [0, 0, 1, 1], [], []>} : vector<1x128xf32>, vector<128x128xf32>, vector<1x128xf32> -> vector<1x128xf32>
    %c0_25 = arith.constant 0 : index
    %c0_26 = arith.constant 0 : index
    %33 = vector.load %arg9[%c0_25, %c0_26] : memref<128x128xf32, #tpu.memory_space<vmem>>, vector<128x128xf32>
    %cst_27 = arith.constant dense<0.000000e+00> : vector<1x128xf32>
    %34 = tpu.matmul %30, %33, %cst_27 {dimension_numbers = #tpu.dot_dimension_numbers<[1], [0], [0], [1], [0, 0, 1, 1], [], []>} : vector<1x128xf32>, vector<128x128xf32>, vector<1x128xf32> -> vector<1x128xf32>
    %35 = arith.addf %32, %34 : vector<1x128xf32>
    %c0_28 = arith.constant 0 : index
    %c0_29 = arith.constant 0 : index
    %36 = vector.load %arg10[%c0_28, %c0_29] : memref<1x128xf32, #tpu.memory_space<vmem>>, vector<1x128xf32>
    %37 = arith.addf %35, %36 : vector<1x128xf32>
    %cst_30 = arith.constant 0.000000e+00 : f32
    %38 = vector.broadcast %cst_30 : f32 to vector<1x128xf32>
    %39 = arith.maximumf %37, %38 : vector<1x128xf32>
    %c0_31 = arith.constant 0 : index
    %c0_32 = arith.constant 0 : index
    %40 = vector.load %arg11[%c0_31, %c0_32] : memref<128x512xf32, #tpu.memory_space<vmem>>, vector<128x512xf32>
    %cst_33 = arith.constant dense<0.000000e+00> : vector<1x512xf32>
    %41 = tpu.matmul %39, %40, %cst_33 {dimension_numbers = #tpu.dot_dimension_numbers<[1], [0], [0], [1], [0, 0, 1, 1], [], []>} : vector<1x128xf32>, vector<128x512xf32>, vector<1x512xf32> -> vector<1x512xf32>
    %c0_34 = arith.constant 0 : index
    %c0_35 = arith.constant 0 : index
    %42 = vector.load %arg12[%c0_34, %c0_35] : memref<128x512xf32, #tpu.memory_space<vmem>>, vector<128x512xf32>
    %cst_36 = arith.constant dense<0.000000e+00> : vector<1x512xf32>
    %43 = tpu.matmul %2, %42, %cst_36 {dimension_numbers = #tpu.dot_dimension_numbers<[1], [0], [0], [1], [0, 0, 1, 1], [], []>} : vector<1x128xf32>, vector<128x512xf32>, vector<1x512xf32> -> vector<1x512xf32>
    %44 = arith.addf %41, %43 : vector<1x512xf32>
    %c0_37 = arith.constant 0 : index
    %c0_38 = arith.constant 0 : index
    %45 = vector.load %arg13[%c0_37, %c0_38] : memref<1x512xf32, #tpu.memory_space<vmem>>, vector<1x512xf32>
    %46 = arith.addf %44, %45 : vector<1x512xf32>
    %47 = vector.extract_strided_slice %46 {offsets = [0, 0], sizes = [1, 128], strides = [1, 1]} : vector<1x512xf32> to vector<1x128xf32>
    %48 = arith.negf %47 : vector<1x128xf32>
    %49 = math.exp %48 : vector<1x128xf32>
    %cst_39 = arith.constant 1.000000e+00 : f32
    %50 = vector.broadcast %cst_39 : f32 to vector<1x128xf32>
    %51 = arith.addf %50, %49 : vector<1x128xf32>
    %52 = arith.divf %50, %51 : vector<1x128xf32>
    %53 = vector.extract_strided_slice %46 {offsets = [0, 128], sizes = [1, 128], strides = [1, 1]} : vector<1x512xf32> to vector<1x128xf32>
    %54 = arith.negf %53 : vector<1x128xf32>
    %55 = math.exp %54 : vector<1x128xf32>
    %cst_40 = arith.constant 1.000000e+00 : f32
    %56 = vector.broadcast %cst_40 : f32 to vector<1x128xf32>
    %57 = arith.addf %56, %55 : vector<1x128xf32>
    %58 = arith.divf %56, %57 : vector<1x128xf32>
    %59 = vector.extract_strided_slice %46 {offsets = [0, 256], sizes = [1, 128], strides = [1, 1]} : vector<1x512xf32> to vector<1x128xf32>
    %60 = math.tanh %59 : vector<1x128xf32>
    %61 = vector.extract_strided_slice %46 {offsets = [0, 384], sizes = [1, 128], strides = [1, 1]} : vector<1x512xf32> to vector<1x128xf32>
    %62 = arith.negf %61 : vector<1x128xf32>
    %63 = math.exp %62 : vector<1x128xf32>
    %cst_41 = arith.constant 1.000000e+00 : f32
    %64 = vector.broadcast %cst_41 : f32 to vector<1x128xf32>
    %65 = arith.addf %64, %63 : vector<1x128xf32>
    %66 = arith.divf %64, %65 : vector<1x128xf32>
    %67 = arith.mulf %58, %3 : vector<1x128xf32>
    %68 = arith.mulf %52, %60 : vector<1x128xf32>
    %69 = arith.addf %67, %68 : vector<1x128xf32>
    %70 = math.tanh %69 : vector<1x128xf32>
    %71 = arith.mulf %66, %70 : vector<1x128xf32>
    %c0_42 = arith.constant 0 : index
    %c0_43 = arith.constant 0 : index
    %72 = vector.load %arg17[%c0_42, %c0_43] : memref<1x128xf32, #tpu.memory_space<vmem>>, vector<1x128xf32>
    tpu.vector_store %arg17[%c0_42, %c0_43], %71 {strides = array<i32>} : memref<1x128xf32, #tpu.memory_space<vmem>>, vector<1x128xf32>,
    %c0_44 = arith.constant 0 : index
    %c0_45 = arith.constant 0 : index
    %73 = vector.load %arg18[%c0_44, %c0_45] : memref<1x128xf32, #tpu.memory_space<vmem>>, vector<1x128xf32>
    tpu.vector_store %arg18[%c0_44, %c0_45], %69 {strides = array<i32>} : memref<1x128xf32, #tpu.memory_space<vmem>>, vector<1x128xf32>,
    %c0_46 = arith.constant 0 : index
    %c0_47 = arith.constant 0 : index
    %74 = vector.load %arg14[%c0_46, %c0_47] : memref<128x128xf32, #tpu.memory_space<vmem>>, vector<128x128xf32>
    %cst_48 = arith.constant dense<0.000000e+00> : vector<1x128xf32>
    %75 = tpu.matmul %71, %74, %cst_48 {dimension_numbers = #tpu.dot_dimension_numbers<[1], [0], [0], [1], [0, 0, 1, 1], [], []>} : vector<1x128xf32>, vector<128x128xf32>, vector<1x128xf32> -> vector<1x128xf32>
    %c0_49 = arith.constant 0 : index
    %c0_50 = arith.constant 0 : index
    %76 = vector.load %arg15[%c0_49, %c0_50] : memref<1x128xf32, #tpu.memory_space<vmem>>, vector<1x128xf32>
    %77 = arith.addf %75, %76 : vector<1x128xf32>
    %78 = tpu.iota {dimensions = array<i32: 1>} : vector<1x128xi32>
    %c40_i32 = arith.constant 40 : i32
    %79 = vector.broadcast %c40_i32 : i32 to vector<1x128xi32>
    %80 = arith.cmpi slt, %78, %79 : vector<1x128xi32>
    %cst_51 = arith.constant -1.000000e+30 : f32
    %81 = vector.broadcast %cst_51 : f32 to vector<1x128xf32>
    %82 = arith.select %80, %77, %81 : vector<1x128xi1>, vector<1x128xf32>
    %cst_52 = arith.constant dense<0xFF800000> : vector<1xf32>
    %83 = vector.multi_reduction <maximumf>, %82, %cst_52 [1] : vector<1x128xf32> to vector<1xf32>
    %84 = vector.shape_cast %83 : vector<1xf32> to vector<1x1xf32>
    %85 = vector.broadcast %84 : vector<1x1xf32> to vector<1x128xf32>
    %86 = arith.subf %82, %85 : vector<1x128xf32>
    %87 = math.exp %86 : vector<1x128xf32>
    %cst_53 = arith.constant dense<0.000000e+00> : vector<1xf32>
    %88 = vector.multi_reduction <add>, %87, %cst_53 [1] : vector<1x128xf32> to vector<1xf32>
    %89 = vector.shape_cast %88 : vector<1xf32> to vector<1x1xf32>
    %90 = math.log %89 : vector<1x1xf32>
    %91 = arith.addf %84, %90 : vector<1x1xf32>
    %92 = vector.broadcast %91 : vector<1x1xf32> to vector<1x128xf32>
    %93 = arith.subf %82, %92 : vector<1x128xf32>
    %c0_54 = arith.constant 0 : index
    %c0_55 = arith.constant 0 : index
    %94 = vector.load %arg16[%c0_54, %c0_55] : memref<1x128xf32, #tpu.memory_space<vmem>>, vector<1x128xf32>
    tpu.vector_store %arg16[%c0_54, %c0_55], %93 {strides = array<i32>} : memref<1x128xf32, #tpu.memory_space<vmem>>, vector<1x128xf32>,
    return
  }
}

</mosaic_0001>

<llo_original>
// kernel: attn_decoder_forward.1
$region0: #{attn_decoder_forward.1}
  #allocation0 [shape = 'u32[]', space=smem, size = 0x4, offset = 0x4, fixed_abs, tag = 'smem constant byte address 0x4 - core index']
  #allocation1 [shape = 'u32[144,128]{1,0:T(1,128)}', space=vmem, size = 0x12000, scoped, tag = 'internal scratch']
  #allocation2 [shape = 'f32[1,128]{1,0:T(1,128)}', space=vmem, size = 0x200, scoped, tag = 'scratch operand']
  #allocation3 [shape = 's32[1]{0}', space=sflag, size = 0x4, scoped, tag = 'scratch operand']
  #allocation4 [shape = 's32[1]{0:T(128)S(6)}', space=smem, size = 0x200, scoped, tag = 'scoped memory for attn_decoder_forward.1']
  #allocation19 [shape = 's32[]', space=sflag, size = 0x4, offset = 0, fixed_abs, tag = 'sflag constant byte address 0x0 - dummy sync flag']
  %s0 = inlined_call_operand.<no memory space> [shape: s32[1], index: 0, kind: input, shape index: {}]
  %s1 = inlined_call_operand.vmem [shape: f32[40,128], index: 1, kind: input, shape index: {}]
  %s2 = inlined_call_operand.vmem [shape: f32[1,128], index: 2, kind: input, shape index: {}]
  %s3 = inlined_call_operand.vmem [shape: f32[1,128], index: 3, kind: input, shape index: {}]
  %s4 = inlined_call_operand.vmem [shape: f32[128,128], index: 4, kind: input, shape index: {}]
  %s5 = inlined_call_operand.vmem [shape: f32[128,128], index: 5, kind: input, shape index: {}]
  %s6 = inlined_call_operand.hbm [shape: f32[128,128], index: 6, kind: input, shape index: {}]
  %s7 = inlined_call_operand.vmem [shape: f32[1,128], index: 7, kind: input, shape index: {}]
  %s8 = inlined_call_operand.hbm [shape: f32[128,128], index: 8, kind: input, shape index: {}]
  %s9 = inlined_call_operand.hbm [shape: f32[128,128], index: 9, kind: input, shape index: {}]
  %s10 = inlined_call_operand.vmem [shape: f32[1,128], index: 10, kind: input, shape index: {}]
  %s11 = inlined_call_operand.hbm [shape: f32[128,512], index: 11, kind: input, shape index: {}]
  %s12 = inlined_call_operand.hbm [shape: f32[128,512], index: 12, kind: input, shape index: {}]
  %s13 = inlined_call_operand.vmem [shape: f32[1,512], index: 13, kind: input, shape index: {}]
  %s14 = inlined_call_operand.hbm [shape: f32[128,128], index: 14, kind: input, shape index: {}]
  %s15 = inlined_call_operand.vmem [shape: f32[1,128], index: 15, kind: input, shape index: {}]
  %s16 = inlined_call_operand.hbm [shape: f32[1,128], index: 16, kind: output, shape index: {0}]
  %s17 = inlined_call_operand.vmem [shape: f32[1,128], index: 17, kind: output, shape index: {1}]
  %s18 = inlined_call_operand.vmem [shape: f32[1,128], index: 18, kind: output, shape index: {2}]
  %s19 = inlined_call_operand.hbm [shape: f32[1,128], index: 19, kind: output, shape index: {3}]
  %20 = xla_tuple %s16, %s17, %s18, %s19
  %s21 = sld [smem:[#allocation0]]
  $region148: #{attn_decoder_forward.1} parent=0
    _
  %s23 = ssub.s32 1, %s21
  %s24 = scalar_select 0, %s23, %s21
  %25 = sst [smem:[#allocation4]] %s0
  $region1: #{attn_decoder_forward.1} parent=0
    #allocation5 [shape = 'u8[65536]{0}', space=vmem, size = 0x10000, scoped, tag = 'input window, operand 6, single buffered']
    #allocation6 [shape = 's32[1]{0}', space=sflag, size = 0x4, scoped, tag = 'scoped memory for attn_decoder_forward.1']
    #allocation7 [shape = 's32[1]{0}', space=sflag, size = 0x4, scoped, tag = 'scoped memory for attn_decoder_forward.1']
    #allocation8 [shape = 'u8[65536]{0}', space=vmem, size = 0x10000, scoped, tag = 'input window, operand 8, single buffered']
    #allocation9 [shape = 's32[1]{0}', space=sflag, size = 0x4, scoped, tag = 'scoped memory for attn_decoder_forward.1']
    #allocation10 [shape = 'u8[65536]{0}', space=vmem, size = 0x10000, scoped, tag = 'input window, operand 9, single buffered']
    #allocation11 [shape = 'u8[262144]{0}', space=vmem, size = 0x40000, scoped, tag = 'input window, operand 11, single buffered']
    #allocation12 [shape = 's32[1]{0}', space=sflag, size = 0x4, scoped, tag = 'scoped memory for attn_decoder_forward.1']
    #allocation13 [shape = 'u8[262144]{0}', space=vmem, size = 0x40000, scoped, tag = 'input window, operand 12, single buffered']
    #allocation14 [shape = 'u8[65536]{0}', space=vmem, size = 0x10000, scoped, tag = 'input window, operand 14, single buffered']
    #allocation15 [shape = 's32[1]{0}', space=sflag, size = 0x4, scoped, tag = 'scoped memory for attn_decoder_forward.1']
    #allocation16 [shape = 'u8[512]{0}', space=vmem, size = 0x400, scoped, tag = 'output window, operand 0, single buffered']
    #allocation17 [shape = 'u8[512]{0}', space=vmem, size = 0x400, scoped, tag = 'output window, operand 3, single buffered']
    #allocation18 [shape = 's32[1]{0}', space=sflag, size = 0x4, scoped, tag = 'scoped memory for attn_decoder_forward.1']
    %26 = vsyncpa [#allocation6], 0
    %27 = vsyncpa [#allocation9], 0
    %28 = vsyncpa [#allocation12], 0
    %29 = vsyncpa [#allocation15], 0
    %30 = vsyncpa [#allocation7], 0
    %31 = vsyncpa [#allocation18], 0
    // Predicated region
    $region2: #{attn_decoder_forward.1} parent=1 // pred_check
      _
    $region3: #{attn_decoder_forward.1} parent=1 // pred_check_branch
      %33 = sbr.rel (0) target = $region5
    $region4: #{attn_decoder_forward.1} parent=1 // pred_region
      _
    $region5: #{attn_decoder_forward.1} parent=1 // pred_fallthru
      _
    // Predicated region
    $region6: #{attn_decoder_forward.1} parent=1 // pred_check
      _
    $region7: #{attn_decoder_forward.1} parent=1 // pred_check_branch
      %35 = sbr.rel (0) target = $region9
    $region8: #{attn_decoder_forward.1} parent=1 // pred_region
      _
    $region9: #{attn_decoder_forward.1} parent=1 // pred_fallthru
      _
    // Predicated region
    $region10: #{attn_decoder_forward.1} parent=1 // pred_check
      _
    $region11: #{attn_decoder_forward.1} parent=1 // pred_check_branch
      %37 = sbr.rel (0) target = $region13
    $region12: #{attn_decoder_forward.1} parent=1 // pred_region
      _
    $region13: #{attn_decoder_forward.1} parent=1 // pred_fallthru
      _
    // Predicated region
    $region14: #{attn_decoder_forward.1} parent=1 // pred_check
      _
    $region15: #{attn_decoder_forward.1} parent=1 // pred_check_branch
      %39 = sbr.rel (0) target = $region17
    $region16: #{attn_decoder_forward.1} parent=1 // pred_region
      _
    $region17: #{attn_decoder_forward.1} parent=1 // pred_fallthru
      _
    // Predicated region
    $region18: #{attn_decoder_forward.1} parent=1 // pred_check
      _
    $region19: #{attn_decoder_forward.1} parent=1 // pred_check_branch
      %41 = sbr.rel (0) target = $region21
    $region20: #{attn_decoder_forward.1} parent=1 // pred_region
      _
    $region21: #{attn_decoder_forward.1} parent=1 // pred_fallthru
      _
    // Predicated region
    $region22: #{attn_decoder_forward.1} parent=1 // pred_check
      _
    $region23: #{attn_decoder_forward.1} parent=1 // pred_check_branch
      %43 = sbr.rel (0) target = $region25
    $region24: #{attn_decoder_forward.1} parent=1 // pred_region
      %s45 = ssub.s32 2048, 2048
      %46 = vsyncadd [#allocation6], %s45
      %s47 = sshll.u32 [#allocation5], 4
      %s48 = int_to_ptr.vmem [resolvable:$true] %s47
      %53 = dma.hbm_to_vmem [thread:$0]  %s6, 2048, %s48, [#allocation6], 128, 128, 8
    $region25: #{attn_decoder_forward.1} parent=1 // pred_fallthru
      _
    // Predicated region
    $region26: #{attn_decoder_forward.1} parent=1 // pred_check
      _
    $region27: #{attn_decoder_forward.1} parent=1 // pred_check_branch
      %55 = sbr.rel (0) target = $region29
    $region28: #{attn_decoder_forward.1} parent=1 // pred_region
      _
    $region29: #{attn_decoder_forward.1} parent=1 // pred_fallthru
      _
    // Predicated region
    $region30: #{attn_decoder_forward.1} parent=1 // pred_check
      _
    $region31: #{attn_decoder_forward.1} parent=1 // pred_check_branch
      %57 = sbr.rel (0) target = $region33
    $region32: #{attn_decoder_forward.1} parent=1 // pred_region
      %s59 = ssub.s32 2048, 2048
      %60 = vsyncadd [#allocation9], %s59
      %s61 = sshll.u32 [#allocation8], 4
      %s62 = int_to_ptr.vmem [resolvable:$true] %s61
      %67 = dma.hbm_to_vmem [thread:$0]  %s8, 2048, %s62, [#allocation9], 128, 128, 8
    $region33: #{attn_decoder_forward.1} parent=1 // pred_fallthru
      _
    // Predicated region
    $region34: #{attn_decoder_forward.1} parent=1 // pred_check
      _
    $region35: #{attn_decoder_forward.1} parent=1 // pred_check_branch
      %69 = sbr.rel (0) target = $region37
    $region36: #{attn_decoder_forward.1} parent=1 // pred_region
      %s71 = ssub.s32 2048, 2048
      %72 = vsyncadd [#allocation9], %s71
      %s73 = sshll.u32 [#allocation10], 4
      %s74 = int_to_ptr.vmem [resolvable:$true] %s73
      %79 = dma.hbm_to_vmem [thread:$0]  %s9, 2048, %s74, [#allocation9], 128, 128, 8
    $region37: #{attn_decoder_forward.1} parent=1 // pred_fallthru
      _
    // Predicated region
    $region38: #{attn_decoder_forward.1} parent=1 // pred_check
      _
    $region39: #{attn_decoder_forward.1} parent=1 // pred_check_branch
      %81 = sbr.rel (0) target = $region41
    $region40: #{attn_decoder_forward.1} parent=1 // pred_region
      _
    $region41: #{attn_decoder_forward.1} parent=1 // pred_fallthru
      _
    // Predicated region
    $region42: #{attn_decoder_forward.1} parent=1 // pred_check
      _
    $region43: #{attn_decoder_forward.1} parent=1 // pred_check_branch
      %83 = sbr.rel (0) target = $region45
    $region44: #{attn_decoder_forward.1} parent=1 // pred_region
      %s85 = ssub.s32 8192, 8192
      %86 = vsyncadd [#allocation12], %s85
      %s87 = sshll.u32 [#allocation11], 4
      %s88 = int_to_ptr.vmem [resolvable:$true] %s87
      %93 = dma.hbm_to_vmem [thread:$0]  %s11, 8192, %s88, [#allocation12], 512, 512, 32
    $region45: #{attn_decoder_forward.1} parent=1 // pred_fallthru
      _
    // Predicated region
    $region46: #{attn_decoder_forward.1} parent=1 // pred_check
      _
    $region47: #{attn_decoder_forward.1} parent=1 // pred_check_branch
      %95 = sbr.rel (0) target = $region49
    $region48: #{attn_decoder_forward.1} parent=1 // pred_region
      %s97 = ssub.s32 8192, 8192
      %98 = vsyncadd [#allocation12], %s97
      %s99 = sshll.u32 [#allocation13], 4
      %s100 = int_to_ptr.vmem [resolvable:$true] %s99
      %105 = dma.hbm_to_vmem [thread:$0]  %s12, 8192, %s100, [#allocation12], 512, 512, 32
    $region49: #{attn_decoder_forward.1} parent=1 // pred_fallthru
      _
    // Predicated region
    $region50: #{attn_decoder_forward.1} parent=1 // pred_check
      _
    $region51: #{attn_decoder_forward.1} parent=1 // pred_check_branch
      %107 = sbr.rel (0) target = $region53
    $region52: #{attn_decoder_forward.1} parent=1 // pred_region
      _
    $region53: #{attn_decoder_forward.1} parent=1 // pred_fallthru
      _
    // Predicated region
    $region54: #{attn_decoder_forward.1} parent=1 // pred_check
      _
    $region55: #{attn_decoder_forward.1} parent=1 // pred_check_branch
      %109 = sbr.rel (0) target = $region57
    $region56: #{attn_decoder_forward.1} parent=1 // pred_region
      %s111 = ssub.s32 2048, 2048
      %112 = vsyncadd [#allocation15], %s111
      %s113 = sshll.u32 [#allocation14], 4
      %s114 = int_to_ptr.vmem [resolvable:$true] %s113
      %119 = dma.hbm_to_vmem [thread:$0]  %s14, 2048, %s114, [#allocation15], 128, 128, 8
    $region57: #{attn_decoder_forward.1} parent=1 // pred_fallthru
      _
    // Predicated region
    $region58: #{attn_decoder_forward.1} parent=1 // pred_check
      _
    $region59: #{attn_decoder_forward.1} parent=1 // pred_check_branch
      %121 = sbr.rel (0) target = $region61
    $region60: #{attn_decoder_forward.1} parent=1 // pred_region
      _
    $region61: #{attn_decoder_forward.1} parent=1 // pred_fallthru
      _
    // Predicated region
    $region62: #{attn_decoder_forward.1} parent=1 // pred_check
      _
    $region63: #{attn_decoder_forward.1} parent=1 // pred_check_branch
      %123 = sbr.rel (0) target = $region65
    $region64: #{attn_decoder_forward.1} parent=1 // pred_region
      %124 = dma.done [#allocation6], 2048
    $region65: #{attn_decoder_forward.1} parent=1 // pred_fallthru
      _
    // Predicated region
    $region66: #{attn_decoder_forward.1} parent=1 // pred_check
      _
    $region67: #{attn_decoder_forward.1} parent=1 // pred_check_branch
      %126 = sbr.rel (0) target = $region69
    $region68: #{attn_decoder_forward.1} parent=1 // pred_region
      %127 = dma.done [#allocation9], 2048
    $region69: #{attn_decoder_forward.1} parent=1 // pred_fallthru
      _
    // Predicated region
    $region70: #{attn_decoder_forward.1} parent=1 // pred_check
      _
    $region71: #{attn_decoder_forward.1} parent=1 // pred_check_branch
      %129 = sbr.rel (0) target = $region73
    $region72: #{attn_decoder_forward.1} parent=1 // pred_region
      %130 = dma.done [#allocation9], 2048
    $region73: #{attn_decoder_forward.1} parent=1 // pred_fallthru
      _
    // Predicated region
    $region74: #{attn_decoder_forward.1} parent=1 // pred_check
      _
    $region75: #{attn_decoder_forward.1} parent=1 // pred_check_branch
      %132 = sbr.rel (0) target = $region77
    $region76: #{attn_decoder_forward.1} parent=1 // pred_region
      %133 = dma.done [#allocation12], 8192
    $region77: #{attn_decoder_forward.1} parent=1 // pred_fallthru
      _
    // Predicated region
    $region78: #{attn_decoder_forward.1} parent=1 // pred_check
      _
    $region79: #{attn_decoder_forward.1} parent=1 // pred_check_branch
      %135 = sbr.rel (0) target = $region81
    $region80: #{attn_decoder_forward.1} parent=1 // pred_region
      %136 = dma.done [#allocation12], 8192
    $region81: #{attn_decoder_forward.1} parent=1 // pred_fallthru
      _
    // Predicated region
    $region82: #{attn_decoder_forward.1} parent=1 // pred_check
      _
    $region83: #{attn_decoder_forward.1} parent=1 // pred_check_branch
      %138 = sbr.rel (0) target = $region85
    $region84: #{attn_decoder_forward.1} parent=1 // pred_region
      %139 = dma.done [#allocation15], 2048
    $region85: #{attn_decoder_forward.1} parent=1 // pred_fallthru
      _
    %s140 = sld [smem:[#allocation4]]
    %s141 = scalar_lea.vmem %s1, %s140
    %p143 = scmp.lt.u32.totalorder 1, 8
    %p144 = pneg %p143
    // Predicated region
    $region86: #{attn_decoder_forward.1} parent=1 // pred_check
      _
    $region87: #{attn_decoder_forward.1} parent=1 // pred_check_branch
      %146 = sbr.rel (%p143) target = $region89
    $region88: #{attn_decoder_forward.1} parent=1 // pred_region
      %s161 = sand.u32 1, 7
      %p162 = scmp.eq.s32.totalorder %s161, 0
      %p163 = pneg %p162
      // Predicated region
      $region101: #{attn_decoder_forward.1} parent=88 // pred_check
        _
      $region102: #{attn_decoder_forward.1} parent=88 // pred_check_branch
        %165 = sbr.rel (%p162) target = $region104
      $region103: #{attn_decoder_forward.1} parent=88 // pred_region
        %s166 = sand.u32 1, 7
        %s167 = ssub.s32 1, %s166
        %s168 = scalar_lea.vmem %s141, %s167
        %s169 = ssub.s32 1, %s166
        %s170 = scalar_lea.vmem [#allocation2], %s169
        %s171 = sshllo.u32 0, %s166
        loop: start=0, step=1, limit=1
        $region105: #{attn_decoder_forward.1} parent=103 // loop_pre_header
          _
        $region106: #{attn_decoder_forward.1} parent=103 // loop_header
          %s173 = sphi 0, %s177
          %p174 = scmp.ge.s32.totalorder %s173, 1
          %s178 = sphi %s168, %s168
          %s179 = sphi %s170, %s170
        $region107: #{attn_decoder_forward.1} parent=103 // loop_header_branch
          %176 = sbr.rel (%p174) target = $region111
        $region108: #{attn_decoder_forward.1} parent=103 // loop_body
          %v180 = vld [vmem:[%s178] sm:%s171]
          %181 = vst [vmem:[%s179] sm:%s171] %v180
        $region109: #{attn_decoder_forward.1} parent=103 // loop_footer
          %s177 = sadd.s32 1, %s173
        $region110: #{attn_decoder_forward.1} parent=103 // loop_footer_branch
          %172 = sbr.rel target = $region106
        $region111: #{attn_decoder_forward.1} parent=103 // loop_exit
          _
      $region104: #{attn_decoder_forward.1} parent=88 // pred_fallthru
        _
    $region89: #{attn_decoder_forward.1} parent=1 // pred_fallthru
      _
    // Predicated region
    $region90: #{attn_decoder_forward.1} parent=1 // pred_check
      %p147 = pneg %p143
    $region91: #{attn_decoder_forward.1} parent=1 // pred_check_branch
      %149 = sbr.rel (%p147) target = $region93
    $region92: #{attn_decoder_forward.1} parent=1 // pred_region
      %s150 = sshllo.u32 0, 1
      loop: start=0, step=1, limit=1
      $region94: #{attn_decoder_forward.1} parent=92 // loop_pre_header
        _
      $region95: #{attn_decoder_forward.1} parent=92 // loop_header
        %s152 = sphi 0, %s156
        %p153 = scmp.ge.s32.totalorder %s152, 1
        %s157 = sphi %s141, %s141
        %s158 = sphi [#allocation2], [#allocation2]
      $region96: #{attn_decoder_forward.1} parent=92 // loop_header_branch
        %155 = sbr.rel (%p153) target = $region100
      $region97: #{attn_decoder_forward.1} parent=92 // loop_body
        %v159 = vld [vmem:[%s157] sm:%s150]
        %160 = vst [vmem:[%s158] sm:%s150] %v159
      $region98: #{attn_decoder_forward.1} parent=92 // loop_footer
        %s156 = sadd.s32 1, %s152
      $region99: #{attn_decoder_forward.1} parent=92 // loop_footer_branch
        %151 = sbr.rel target = $region95
      $region100: #{attn_decoder_forward.1} parent=92 // loop_exit
        _
    $region93: #{attn_decoder_forward.1} parent=1 // pred_fallthru
      _
    // Predicated region
    $region112: #{attn_decoder_forward.1} parent=1 // pred_check
      _
    $region113: #{attn_decoder_forward.1} parent=1 // pred_check_branch
      %184 = sbr.rel (0) target = $region115
    $region114: #{attn_decoder_forward.1} parent=1 // pred_region
      %185 = vsyncadd [#allocation3], 16
    $region115: #{attn_decoder_forward.1} parent=1 // pred_fallthru
      _
    %v186 = vld [vmem:[%s2] sm:$0x1]
    %v187 = vld [vmem:[%s3] sm:$0x1]
    %v188 = vld [vmem:[#allocation5] sm:$0xff]
    %v189 = vld [vmem:[#allocation5 + $0x8] sm:$0xff]
    %v190 = vld [vmem:[#allocation5 + $0x10] sm:$0xff]
    %v191 = vld [vmem:[#allocation5 + $0x18] sm:$0xff]
    %v192 = vld [vmem:[#allocation5 + $0x20] sm:$0xff]
    %v193 = vld [vmem:[#allocation5 + $0x28] sm:$0xff]
    %v194 = vld [vmem:[#allocation5 + $0x30] sm:$0xff]
    %v195 = vld [vmem:[#allocation5 + $0x38] sm:$0xff]
    %v196 = vld [vmem:[#allocation5 + $0x40] sm:$0xff]
    %v197 = vld [vmem:[#allocation5 + $0x48] sm:$0xff]
    %v198 = vld [vmem:[#allocation5 + $0x50] sm:$0xff]
    %v199 = vld [vmem:[#allocation5 + $0x58] sm:$0xff]
    %v200 = vld [vmem:[#allocation5 + $0x60] sm:$0xff]
    %v201 = vld [vmem:[#allocation5 + $0x68] sm:$0xff]
    %v202 = vld [vmem:[#allocation5 + $0x70] sm:$0xff]
    %v203 = vld [vmem:[#allocation5 + $0x78] sm:$0xff]
    %s204 = smul.u32 1, 1
    %s205 = sshll.u32 %s204, 4
    %206 = dma.done [#allocation3], %s205
    %v207 = vld [vmem:[#allocation2] sm:$0x1]
    %v208 = vld [vmem:[%s5] sm:$0xff]
    %v209 = vld [vmem:[%s5 + $0x8] sm:$0xff]
    %v210 = vld [vmem:[%s5 + $0x10] sm:$0xff]
    %v211 = vld [vmem:[%s5 + $0x18] sm:$0xff]
    %v212 = vld [vmem:[%s5 + $0x20] sm:$0xff]
    %v213 = vld [vmem:[%s5 + $0x28] sm:$0xff]
    %v214 = vld [vmem:[%s5 + $0x30] sm:$0xff]
    %v215 = vld [vmem:[%s5 + $0x38] sm:$0xff]
    %v216 = vld [vmem:[%s5 + $0x40] sm:$0xff]
    %v217 = vld [vmem:[%s5 + $0x48] sm:$0xff]
    %v218 = vld [vmem:[%s5 + $0x50] sm:$0xff]
    %v219 = vld [vmem:[%s5 + $0x58] sm:$0xff]
    %v220 = vld [vmem:[%s5 + $0x60] sm:$0xff]
    %v221 = vld [vmem:[%s5 + $0x68] sm:$0xff]
    %v222 = vld [vmem:[%s5 + $0x70] sm:$0xff]
    %v223 = vld [vmem:[%s5 + $0x78] sm:$0xff]
    %224 = vmatprep.subr.mxu0 0.0
    %225 = vmatpush1.msra.mxu0 %v208
    %226 = vmatprep.subr.mxu0 0.0
    %227 = vmatpush1.msra.mxu0 %v209
    %228 = vmatprep.subr.mxu0 0.0
    %229 = vmatpush1.msra.mxu0 %v210
    %230 = vmatprep.subr.mxu0 0.0
    %231 = vmatpush1.msra.mxu0 %v211
    %232 = vmatprep.subr.mxu0 0.0
    %233 = vmatpush1.msra.mxu0 %v212
    %234 = vmatprep.subr.mxu0 0.0
    %235 = vmatpush1.msra.mxu0 %v213
    %236 = vmatprep.subr.mxu0 0.0
    %237 = vmatpush1.msra.mxu0 %v214
    %238 = vmatprep.subr.mxu0 0.0
    %239 = vmatpush1.msra.mxu0 %v215
    %240 = vmatprep.subr.mxu0 0.0
    %241 = vmatpush1.msra.mxu0 %v216
    %242 = vmatprep.subr.mxu0 0.0
    %243 = vmatpush1.msra.mxu0 %v217
    %244 = vmatprep.subr.mxu0 0.0
    %245 = vmatpush1.msra.mxu0 %v218
    %246 = vmatprep.subr.mxu0 0.0
    %247 = vmatpush1.msra.mxu0 %v219
    %248 = vmatprep.subr.mxu0 0.0
    %249 = vmatpush1.msra.mxu0 %v220
    %250 = vmatprep.subr.mxu0 0.0
    %251 = vmatpush1.msra.mxu0 %v221
    %252 = vmatprep.subr.mxu0 0.0
    %253 = vmatpush1.msra.mxu0 %v222
    %254 = vmatprep.subr.mxu0 0.0
    %255 = vmatpush1.msra.mxu0 %v223
    %256 = vmatprep.subr.mxu0 0.0
    %257 = vmatpush1.msra.mxu0 0.0
    %258 = vmatprep.subr.mxu0 0.0
    %259 = vmatpush1.msra.mxu0 0.0
    %260 = vmatprep.subr.mxu0 0.0
    %261 = vmatpush1.msra.mxu0 0.0
    %262 = vmatprep.subr.mxu0 0.0
    %263 = vmatpush1.msra.mxu0 0.0
    %264 = vmatprep.subr.mxu0 0.0
    %265 = vmatpush1.msra.mxu0 0.0
    %266 = vmatprep.subr.mxu0 0.0
    %267 = vmatpush1.msra.mxu0 0.0
    %268 = vmatprep.subr.mxu0 0.0
    %269 = vmatpush1.msra.mxu0 0.0
    %270 = vmatprep.subr.mxu0 0.0
    %271 = vmatpush1.msra.mxu0 0.0
    %272 = vmatprep.subr.mxu0 0.0
    %273 = vmatpush1.msra.mxu0 0.0
    %274 = vmatprep.subr.mxu0 0.0
    %275 = vmatpush1.msra.mxu0 0.0
    %276 = vmatprep.subr.mxu0 0.0
    %277 = vmatpush1.msra.mxu0 0.0
    %278 = vmatprep.subr.mxu0 0.0
    %279 = vmatpush1.msra.mxu0 0.0
    %280 = vmatprep.subr.mxu0 0.0
    %281 = vmatpush1.msra.mxu0 0.0
    %282 = vmatprep.subr.mxu0 0.0
    %283 = vmatpush1.msra.mxu0 0.0
    %284 = vmatprep.subr.mxu0 0.0
    %285 = vmatpush1.msra.mxu0 0.0
    %286 = vmatprep.subr.mxu0 0.0
    %287 = vmatpush1.msra.mxu0 0.0
    %288 = vmatprep.mubr.f32.mxu0 0.0
    %289 = vmatmul.mubr.f32.gmra.mrb[0].mxu0 %v207
    %v290 = vpop.f32.mrb[0].mxu0
    %v291 = vadd.f32 0.0, %v290
    %v292 = vpop.f32.mrb[0].mxu0
    %293 = vdwg.mxu0
    %294 = vmatprep.subr.mxu0 0.0
    %295 = vmatpush1.msra.mxu0 %v188
    %296 = vmatprep.subr.mxu0 0.0
    %297 = vmatpush1.msra.mxu0 %v189
    %298 = vmatprep.subr.mxu0 0.0
    %299 = vmatpush1.msra.mxu0 %v190
    %300 = vmatprep.subr.mxu0 0.0
    %301 = vmatpush1.msra.mxu0 %v191
    %302 = vmatprep.subr.mxu0 0.0
    %303 = vmatpush1.msra.mxu0 %v192
    %304 = vmatprep.subr.mxu0 0.0
    %305 = vmatpush1.msra.mxu0 %v193
    %306 = vmatprep.subr.mxu0 0.0
    %307 = vmatpush1.msra.mxu0 %v194
    %308 = vmatprep.subr.mxu0 0.0
    %309 = vmatpush1.msra.mxu0 %v195
    %310 = vmatprep.subr.mxu0 0.0
    %311 = vmatpush1.msra.mxu0 %v196
    %312 = vmatprep.subr.mxu0 0.0
    %313 = vmatpush1.msra.mxu0 %v197
    %314 = vmatprep.subr.mxu0 0.0
    %315 = vmatpush1.msra.mxu0 %v198
    %316 = vmatprep.subr.mxu0 0.0
    %317 = vmatpush1.msra.mxu0 %v199
    %318 = vmatprep.subr.mxu0 0.0
    %319 = vmatpush1.msra.mxu0 %v200
    %320 = vmatprep.subr.mxu0 0.0
    %321 = vmatpush1.msra.mxu0 %v201
    %322 = vmatprep.subr.mxu0 0.0
    %323 = vmatpush1.msra.mxu0 %v202
    %324 = vmatprep.subr.mxu0 0.0
    %325 = vmatpush1.msra.mxu0 %v203
    %326 = vmatprep.subr.mxu0 0.0
    %327 = vmatpush1.msra.mxu0 0.0
    %328 = vmatprep.subr.mxu0 0.0
    %329 = vmatpush1.msra.mxu0 0.0
    %330 = vmatprep.subr.mxu0 0.0
    %331 = vmatpush1.msra.mxu0 0.0
    %332 = vmatprep.subr.mxu0 0.0
    %333 = vmatpush1.msra.mxu0 0.0
    %334 = vmatprep.subr.mxu0 0.0
    %335 = vmatpush1.msra.mxu0 0.0
    %336 = vmatprep.subr.mxu0 0.0
    %337 = vmatpush1.msra.mxu0 0.0
    %338 = vmatprep.subr.mxu0 0.0
    %339 = vmatpush1.msra.mxu0 0.0
    %340 = vmatprep.subr.mxu0 0.0
    %341 = vmatpush1.msra.mxu0 0.0
    %342 = vmatprep.subr.mxu0 0.0
    %343 = vmatpush1.msra.mxu0 0.0
    %344 = vmatprep.subr.mxu0 0.0
    %345 = vmatpush1.msra.mxu0 0.0
    %346 = vmatprep.subr.mxu0 0.0
    %347 = vmatpush1.msra.mxu0 0.0
    %348 = vmatprep.subr.mxu0 0.0
    %349 = vmatpush1.msra.mxu0 0.0
    %350 = vmatprep.subr.mxu0 0.0
    %351 = vmatpush1.msra.mxu0 0.0
    %352 = vmatprep.subr.mxu0 0.0
    %353 = vmatpush1.msra.mxu0 0.0
    %354 = vmatprep.subr.mxu0 0.0
    %355 = vmatpush1.msra.mxu0 0.0
    %356 = vmatprep.subr.mxu0 0.0
    %357 = vmatpush1.msra.mxu0 0.0
    %358 = vmatprep.mubr.f32.mxu0 0.0
    %359 = vmatmul.mubr.f32.gmra.mrb[0].mxu0 %v186
    %v360 = vpop.f32.mrb[0].mxu0
    %v361 = vadd.f32 %v291, %v360
    %v362 = vpop.f32.mrb[0].mxu0
    %363 = vdwg.mxu0
    %v364 = vld [vmem:[%s7] sm:$0x1]
    %v365 = vadd.f32 %v361, %v364
    %v366 = vlaneseq
    %v367 = vand.u32 %v366, 127
    %vm368 = vcmp.lt.s32.totalorder %v367, 24
    %v369 = vsel %vm368, %v365, -1e+30
    %vm370 = vcmask 1040384
    %v371 = vsel %vm370, %v369, -inf
    %372 = vmax.xlane.f32.xlu0 %v371
    %v373 = vpop.xlane.xlu0 %372
    %v374 = vsub.f32 %v369, %v373
    %v375 = vmul.f32 %v374, 1.442695
    %v376 = vpow.pop %v375
    %v377 = vsel %vm370, %v376, 0.0
    %378 = vadd.xlane.f32.xlu0 %v377
    %v379 = vpop.xlane.xlu0 %378
    %v380 = vrcp.pop %v379
    %v381 = vmul.f32 %v376, %v380
    %382 = vst [vmem:[#allocation17] sm:$0x1] %v381
    %v383 = vld [vmem:[%s4] sm:$0xff]
    %v384 = vld [vmem:[%s4 + $0x8] sm:$0xff]
    %v385 = vld [vmem:[%s4 + $0x10] sm:$0xff]
    %v386 = vld [vmem:[%s4 + $0x18] sm:$0xff]
    %v387 = vld [vmem:[%s4 + $0x20] sm:$0xff]
    %v388 = vld [vmem:[%s4 + $0x28] sm:$0xff]
    %v389 = vld [vmem:[%s4 + $0x30] sm:$0xff]
    %v390 = vld [vmem:[%s4 + $0x38] sm:$0xff]
    %v391 = vld [vmem:[%s4 + $0x40] sm:$0xff]
    %v392 = vld [vmem:[%s4 + $0x48] sm:$0xff]
    %v393 = vld [vmem:[%s4 + $0x50] sm:$0xff]
    %v394 = vld [vmem:[%s4 + $0x58] sm:$0xff]
    %v395 = vld [vmem:[%s4 + $0x60] sm:$0xff]
    %v396 = vld [vmem:[%s4 + $0x68] sm:$0xff]
    %v397 = vld [vmem:[%s4 + $0x70] sm:$0xff]
    %v398 = vld [vmem:[%s4 + $0x78] sm:$0xff]
    %399 = vmatprep.subr.mxu0 0.0
    %400 = vmatpush1.msra.mxu0 %v383
    %401 = vmatprep.subr.mxu0 0.0
    %402 = vmatpush1.msra.mxu0 %v384
    %403 = vmatprep.subr.mxu0 0.0
    %404 = vmatpush1.msra.mxu0 %v385
    %405 = vmatprep.subr.mxu0 0.0
    %406 = vmatpush1.msra.mxu0 %v386
    %407 = vmatprep.subr.mxu0 0.0
    %408 = vmatpush1.msra.mxu0 %v387
    %409 = vmatprep.subr.mxu0 0.0
    %410 = vmatpush1.msra.mxu0 %v388
    %411 = vmatprep.subr.mxu0 0.0
    %412 = vmatpush1.msra.mxu0 %v389
    %413 = vmatprep.subr.mxu0 0.0
    %414 = vmatpush1.msra.mxu0 %v390
    %415 = vmatprep.subr.mxu0 0.0
    %416 = vmatpush1.msra.mxu0 %v391
    %417 = vmatprep.subr.mxu0 0.0
    %418 = vmatpush1.msra.mxu0 %v392
    %419 = vmatprep.subr.mxu0 0.0
    %420 = vmatpush1.msra.mxu0 %v393
    %421 = vmatprep.subr.mxu0 0.0
    %422 = vmatpush1.msra.mxu0 %v394
    %423 = vmatprep.subr.mxu0 0.0
    %424 = vmatpush1.msra.mxu0 %v395
    %425 = vmatprep.subr.mxu0 0.0
    %426 = vmatpush1.msra.mxu0 %v396
    %427 = vmatprep.subr.mxu0 0.0
    %428 = vmatpush1.msra.mxu0 %v397
    %429 = vmatprep.subr.mxu0 0.0
    %430 = vmatpush1.msra.mxu0 %v398
    %431 = vmatprep.subr.mxu0 0.0
    %432 = vmatpush1.msra.mxu0 0.0
    %433 = vmatprep.subr.mxu0 0.0
    %434 = vmatpush1.msra.mxu0 0.0
    %435 = vmatprep.subr.mxu0 0.0
    %436 = vmatpush1.msra.mxu0 0.0
    %437 = vmatprep.subr.mxu0 0.0
    %438 = vmatpush1.msra.mxu0 0.0
    %439 = vmatprep.subr.mxu0 0.0
    %440 = vmatpush1.msra.mxu0 0.0
    %441 = vmatprep.subr.mxu0 0.0
    %442 = vmatpush1.msra.mxu0 0.0
    %443 = vmatprep.subr.mxu0 0.0
    %444 = vmatpush1.msra.mxu0 0.0
    %445 = vmatprep.subr.mxu0 0.0
    %446 = vmatpush1.msra.mxu0 0.0
    %447 = vmatprep.subr.mxu0 0.0
    %448 = vmatpush1.msra.mxu0 0.0
    %449 = vmatprep.subr.mxu0 0.0
    %450 = vmatpush1.msra.mxu0 0.0
    %451 = vmatprep.subr.mxu0 0.0
    %452 = vmatpush1.msra.mxu0 0.0
    %453 = vmatprep.subr.mxu0 0.0
    %454 = vmatpush1.msra.mxu0 0.0
    %455 = vmatprep.subr.mxu0 0.0
    %456 = vmatpush1.msra.mxu0 0.0
    %457 = vmatprep.subr.mxu0 0.0
    %458 = vmatpush1.msra.mxu0 0.0
    %459 = vmatprep.subr.mxu0 0.0
    %460 = vmatpush1.msra.mxu0 0.0
    %461 = vmatprep.subr.mxu0 0.0
    %462 = vmatpush1.msra.mxu0 0.0
    %463 = vmatprep.mubr.f32.mxu0 0.0
    %464 = vmatmul.mubr.f32.gmra.mrb[0].mxu0 %v381
    %v465 = vpop.f32.mrb[0].mxu0
    %v466 = vadd.f32 0.0, %v465
    %v467 = vpop.f32.mrb[0].mxu0
    %468 = vdwg.mxu0
    %v469 = vld [vmem:[#allocation8] sm:$0xff]
    %v470 = vld [vmem:[#allocation8 + $0x8] sm:$0xff]
    %v471 = vld [vmem:[#allocation8 + $0x10] sm:$0xff]
    %v472 = vld [vmem:[#allocation8 + $0x18] sm:$0xff]
    %v473 = vld [vmem:[#allocation8 + $0x20] sm:$0xff]
    %v474 = vld [vmem:[#allocation8 + $0x28] sm:$0xff]
    %v475 = vld [vmem:[#allocation8 + $0x30] sm:$0xff]
    %v476 = vld [vmem:[#allocation8 + $0x38] sm:$0xff]
    %v477 = vld [vmem:[#allocation8 + $0x40] sm:$0xff]
    %v478 = vld [vmem:[#allocation8 + $0x48] sm:$0xff]
    %v479 = vld [vmem:[#allocation8 + $0x50] sm:$0xff]
    %v480 = vld [vmem:[#allocation8 + $0x58] sm:$0xff]
    %v481 = vld [vmem:[#allocation8 + $0x60] sm:$0xff]
    %v482 = vld [vmem:[#allocation8 + $0x68] sm:$0xff]
    %v483 = vld [vmem:[#allocation8 + $0x70] sm:$0xff]
    %v484 = vld [vmem:[#allocation8 + $0x78] sm:$0xff]
    %v485 = vld [vmem:[#allocation10] sm:$0xff]
    %v486 = vld [vmem:[#allocation10 + $0x8] sm:$0xff]
    %v487 = vld [vmem:[#allocation10 + $0x10] sm:$0xff]
    %v488 = vld [vmem:[#allocation10 + $0x18] sm:$0xff]
    %v489 = vld [vmem:[#allocation10 + $0x20] sm:$0xff]
    %v490 = vld [vmem:[#allocation10 + $0x28] sm:$0xff]
    %v491 = vld [vmem:[#allocation10 + $0x30] sm:$0xff]
    %v492 = vld [vmem:[#allocation10 + $0x38] sm:$0xff]
    %v493 = vld [vmem:[#allocation10 + $0x40] sm:$0xff]
    %v494 = vld [vmem:[#allocation10 + $0x48] sm:$0xff]
    %v495 = vld [vmem:[#allocation10 + $0x50] sm:$0xff]
    %v496 = vld [vmem:[#allocation10 + $0x58] sm:$0xff]
    %v497 = vld [vmem:[#allocation10 + $0x60] sm:$0xff]
    %v498 = vld [vmem:[#allocation10 + $0x68] sm:$0xff]
    %v499 = vld [vmem:[#allocation10 + $0x70] sm:$0xff]
    %v500 = vld [vmem:[#allocation10 + $0x78] sm:$0xff]
    %501 = vmatprep.subr.mxu0 0.0
    %502 = vmatpush1.msra.mxu0 %v485
    %503 = vmatprep.subr.mxu0 0.0
    %504 = vmatpush1.msra.mxu0 %v486
    %505 = vmatprep.subr.mxu0 0.0
    %506 = vmatpush1.msra.mxu0 %v487
    %507 = vmatprep.subr.mxu0 0.0
    %508 = vmatpush1.msra.mxu0 %v488
    %509 = vmatprep.subr.mxu0 0.0
    %510 = vmatpush1.msra.mxu0 %v489
    %511 = vmatprep.subr.mxu0 0.0
    %512 = vmatpush1.msra.mxu0 %v490
    %513 = vmatprep.subr.mxu0 0.0
    %514 = vmatpush1.msra.mxu0 %v491
    %515 = vmatprep.subr.mxu0 0.0
    %516 = vmatpush1.msra.mxu0 %v492
    %517 = vmatprep.subr.mxu0 0.0
    %518 = vmatpush1.msra.mxu0 %v493
    %519 = vmatprep.subr.mxu0 0.0
    %520 = vmatpush1.msra.mxu0 %v494
    %521 = vmatprep.subr.mxu0 0.0
    %522 = vmatpush1.msra.mxu0 %v495
    %523 = vmatprep.subr.mxu0 0.0
    %524 = vmatpush1.msra.mxu0 %v496
    %525 = vmatprep.subr.mxu0 0.0
    %526 = vmatpush1.msra.mxu0 %v497
    %527 = vmatprep.subr.mxu0 0.0
    %528 = vmatpush1.msra.mxu0 %v498
    %529 = vmatprep.subr.mxu0 0.0
    %530 = vmatpush1.msra.mxu0 %v499
    %531 = vmatprep.subr.mxu0 0.0
    %532 = vmatpush1.msra.mxu0 %v500
    %533 = vmatprep.subr.mxu0 0.0
    %534 = vmatpush1.msra.mxu0 0.0
    %535 = vmatprep.subr.mxu0 0.0
    %536 = vmatpush1.msra.mxu0 0.0
    %537 = vmatprep.subr.mxu0 0.0
    %538 = vmatpush1.msra.mxu0 0.0
    %539 = vmatprep.subr.mxu0 0.0
    %540 = vmatpush1.msra.mxu0 0.0
    %541 = vmatprep.subr.mxu0 0.0
    %542 = vmatpush1.msra.mxu0 0.0
    %543 = vmatprep.subr.mxu0 0.0
    %544 = vmatpush1.msra.mxu0 0.0
    %545 = vmatprep.subr.mxu0 0.0
    %546 = vmatpush1.msra.mxu0 0.0
    %547 = vmatprep.subr.mxu0 0.0
    %548 = vmatpush1.msra.mxu0 0.0
    %549 = vmatprep.subr.mxu0 0.0
    %550 = vmatpush1.msra.mxu0 0.0
    %551 = vmatprep.subr.mxu0 0.0
    %552 = vmatpush1.msra.mxu0 0.0
    %553 = vmatprep.subr.mxu0 0.0
    %554 = vmatpush1.msra.mxu0 0.0
    %555 = vmatprep.subr.mxu0 0.0
    %556 = vmatpush1.msra.mxu0 0.0
    %557 = vmatprep.subr.mxu0 0.0
    %558 = vmatpush1.msra.mxu0 0.0
    %559 = vmatprep.subr.mxu0 0.0
    %560 = vmatpush1.msra.mxu0 0.0
    %561 = vmatprep.subr.mxu0 0.0
    %562 = vmatpush1.msra.mxu0 0.0
    %563 = vmatprep.subr.mxu0 0.0
    %564 = vmatpush1.msra.mxu0 0.0
    %565 = vmatprep.mubr.f32.mxu0 0.0
    %566 = vmatmul.mubr.f32.gmra.mrb[0].mxu0 %v466
    %v567 = vpop.f32.mrb[0].mxu0
    %v568 = vadd.f32 0.0, %v567
    %v569 = vpop.f32.mrb[0].mxu0
    %570 = vdwg.mxu0
    %571 = vmatprep.subr.mxu0 0.0
    %572 = vmatpush1.msra.mxu0 %v469
    %573 = vmatprep.subr.mxu0 0.0
    %574 = vmatpush1.msra.mxu0 %v470
    %575 = vmatprep.subr.mxu0 0.0
    %576 = vmatpush1.msra.mxu0 %v471
    %577 = vmatprep.subr.mxu0 0.0
    %578 = vmatpush1.msra.mxu0 %v472
    %579 = vmatprep.subr.mxu0 0.0
    %580 = vmatpush1.msra.mxu0 %v473
    %581 = vmatprep.subr.mxu0 0.0
    %582 = vmatpush1.msra.mxu0 %v474
    %583 = vmatprep.subr.mxu0 0.0
    %584 = vmatpush1.msra.mxu0 %v475
    %585 = vmatprep.subr.mxu0 0.0
    %586 = vmatpush1.msra.mxu0 %v476
    %587 = vmatprep.subr.mxu0 0.0
    %588 = vmatpush1.msra.mxu0 %v477
    %589 = vmatprep.subr.mxu0 0.0
    %590 = vmatpush1.msra.mxu0 %v478
    %591 = vmatprep.subr.mxu0 0.0
    %592 = vmatpush1.msra.mxu0 %v479
    %593 = vmatprep.subr.mxu0 0.0
    %594 = vmatpush1.msra.mxu0 %v480
    %595 = vmatprep.subr.mxu0 0.0
    %596 = vmatpush1.msra.mxu0 %v481
    %597 = vmatprep.subr.mxu0 0.0
    %598 = vmatpush1.msra.mxu0 %v482
    %599 = vmatprep.subr.mxu0 0.0
    %600 = vmatpush1.msra.mxu0 %v483
    %601 = vmatprep.subr.mxu0 0.0
    %602 = vmatpush1.msra.mxu0 %v484
    %603 = vmatprep.subr.mxu0 0.0
    %604 = vmatpush1.msra.mxu0 0.0
    %605 = vmatprep.subr.mxu0 0.0
    %606 = vmatpush1.msra.mxu0 0.0
    %607 = vmatprep.subr.mxu0 0.0
    %608 = vmatpush1.msra.mxu0 0.0
    %609 = vmatprep.subr.mxu0 0.0
    %610 = vmatpush1.msra.mxu0 0.0
    %611 = vmatprep.subr.mxu0 0.0
    %612 = vmatpush1.msra.mxu0 0.0
    %613 = vmatprep.subr.mxu0 0.0
    %614 = vmatpush1.msra.mxu0 0.0
    %615 = vmatprep.subr.mxu0 0.0
    %616 = vmatpush1.msra.mxu0 0.0
    %617 = vmatprep.subr.mxu0 0.0
    %618 = vmatpush1.msra.mxu0 0.0
    %619 = vmatprep.subr.mxu0 0.0
    %620 = vmatpush1.msra.mxu0 0.0
    %621 = vmatprep.subr.mxu0 0.0
    %622 = vmatpush1.msra.mxu0 0.0
    %623 = vmatprep.subr.mxu0 0.0
    %624 = vmatpush1.msra.mxu0 0.0
    %625 = vmatprep.subr.mxu0 0.0
    %626 = vmatpush1.msra.mxu0 0.0
    %627 = vmatprep.subr.mxu0 0.0
    %628 = vmatpush1.msra.mxu0 0.0
    %629 = vmatprep.subr.mxu0 0.0
    %630 = vmatpush1.msra.mxu0 0.0
    %631 = vmatprep.subr.mxu0 0.0
    %632 = vmatpush1.msra.mxu0 0.0
    %633 = vmatprep.subr.mxu0 0.0
    %634 = vmatpush1.msra.mxu0 0.0
    %635 = vmatprep.mubr.f32.mxu0 0.0
    %636 = vmatmul.mubr.f32.gmra.mrb[0].mxu0 %v207
    %v637 = vpop.f32.mrb[0].mxu0
    %v638 = vadd.f32 %v568, %v637
    %v639 = vpop.f32.mrb[0].mxu0
    %640 = vdwg.mxu0
    %v641 = vld [vmem:[%s10] sm:$0x1]
    %v642 = vadd.f32 %v638, %v641
    %v643 = vmax.f32 %v642, 0.0
    %v644 = vld [vmem:[#allocation11] sm:$0xff]
    %v645 = vld [vmem:[#allocation11 + $0x8] sm:$0xff]
    %v646 = vld [vmem:[#allocation11 + $0x10] sm:$0xff]
    %v647 = vld [vmem:[#allocation11 + $0x18] sm:$0xff]
    %v648 = vld [vmem:[#allocation11 + $0x20] sm:$0xff]
    %v649 = vld [vmem:[#allocation11 + $0x28] sm:$0xff]
    %v650 = vld [vmem:[#allocation11 + $0x30] sm:$0xff]
    %v651 = vld [vmem:[#allocation11 + $0x38] sm:$0xff]
    %v652 = vld [vmem:[#allocation11 + $0x40] sm:$0xff]
    %v653 = vld [vmem:[#allocation11 + $0x48] sm:$0xff]
    %v654 = vld [vmem:[#allocation11 + $0x50] sm:$0xff]
    %v655 = vld [vmem:[#allocation11 + $0x58] sm:$0xff]
    %v656 = vld [vmem:[#allocation11 + $0x60] sm:$0xff]
    %v657 = vld [vmem:[#allocation11 + $0x68] sm:$0xff]
    %v658 = vld [vmem:[#allocation11 + $0x70] sm:$0xff]
    %v659 = vld [vmem:[#allocation11 + $0x78] sm:$0xff]
    %v660 = vld [vmem:[#allocation11 + $0x80] sm:$0xff]
    %v661 = vld [vmem:[#allocation11 + $0x88] sm:$0xff]
    %v662 = vld [vmem:[#allocation11 + $0x90] sm:$0xff]
    %v663 = vld [vmem:[#allocation11 + $0x98] sm:$0xff]
    %v664 = vld [vmem:[#allocation11 + $0xa0] sm:$0xff]
    %v665 = vld [vmem:[#allocation11 + $0xa8] sm:$0xff]
    %v666 = vld [vmem:[#allocation11 + $0xb0] sm:$0xff]
    %v667 = vld [vmem:[#allocation11 + $0xb8] sm:$0xff]
    %v668 = vld [vmem:[#allocation11 + $0xc0] sm:$0xff]
    %v669 = vld [vmem:[#allocation11 + $0xc8] sm:$0xff]
    %v670 = vld [vmem:[#allocation11 + $0xd0] sm:$0xff]
    %v671 = vld [vmem:[#allocation11 + $0xd8] sm:$0xff]
    %v672 = vld [vmem:[#allocation11 + $0xe0] sm:$0xff]
    %v673 = vld [vmem:[#allocation11 + $0xe8] sm:$0xff]
    %v674 = vld [vmem:[#allocation11 + $0xf0] sm:$0xff]
    %v675 = vld [vmem:[#allocation11 + $0xf8] sm:$0xff]
    %v676 = vld [vmem:[#allocation11 + $0x100] sm:$0xff]
    %v677 = vld [vmem:[#allocation11 + $0x108] sm:$0xff]
    %v678 = vld [vmem:[#allocation11 + $0x110] sm:$0xff]
    %v679 = vld [vmem:[#allocation11 + $0x118] sm:$0xff]
    %v680 = vld [vmem:[#allocation11 + $0x120] sm:$0xff]
    %v681 = vld [vmem:[#allocation11 + $0x128] sm:$0xff]
    %v682 = vld [vmem:[#allocation11 + $0x130] sm:$0xff]
    %v683 = vld [vmem:[#allocation11 + $0x138] sm:$0xff]
    %v684 = vld [vmem:[#allocation11 + $0x140] sm:$0xff]
    %v685 = vld [vmem:[#allocation11 + $0x148] sm:$0xff]
    %v686 = vld [vmem:[#allocation11 + $0x150] sm:$0xff]
    %v687 = vld [vmem:[#allocation11 + $0x158] sm:$0xff]
    %v688 = vld [vmem:[#allocation11 + $0x160] sm:$0xff]
    %v689 = vld [vmem:[#allocation11 + $0x168] sm:$0xff]
    %v690 = vld [vmem:[#allocation11 + $0x170] sm:$0xff]
    %v691 = vld [vmem:[#allocation11 + $0x178] sm:$0xff]
    %v692 = vld [vmem:[#allocation11 + $0x180] sm:$0xff]
    %v693 = vld [vmem:[#allocation11 + $0x188] sm:$0xff]
    %v694 = vld [vmem:[#allocation11 + $0x190] sm:$0xff]
    %v695 = vld [vmem:[#allocation11 + $0x198] sm:$0xff]
    %v696 = vld [vmem:[#allocation11 + $0x1a0] sm:$0xff]
    %v697 = vld [vmem:[#allocation11 + $0x1a8] sm:$0xff]
    %v698 = vld [vmem:[#allocation11 + $0x1b0] sm:$0xff]
    %v699 = vld [vmem:[#allocation11 + $0x1b8] sm:$0xff]
    %v700 = vld [vmem:[#allocation11 + $0x1c0] sm:$0xff]
    %v701 = vld [vmem:[#allocation11 + $0x1c8] sm:$0xff]
    %v702 = vld [vmem:[#allocation11 + $0x1d0] sm:$0xff]
    %v703 = vld [vmem:[#allocation11 + $0x1d8] sm:$0xff]
    %v704 = vld [vmem:[#allocation11 + $0x1e0] sm:$0xff]
    %v705 = vld [vmem:[#allocation11 + $0x1e8] sm:$0xff]
    %v706 = vld [vmem:[#allocation11 + $0x1f0] sm:$0xff]
    %v707 = vld [vmem:[#allocation11 + $0x1f8] sm:$0xff]
    %v708 = vld [vmem:[#allocation13] sm:$0xff]
    %v709 = vld [vmem:[#allocation13 + $0x8] sm:$0xff]
    %v710 = vld [vmem:[#allocation13 + $0x10] sm:$0xff]
    %v711 = vld [vmem:[#allocation13 + $0x18] sm:$0xff]
    %v712 = vld [vmem:[#allocation13 + $0x20] sm:$0xff]
    %v713 = vld [vmem:[#allocation13 + $0x28] sm:$0xff]
    %v714 = vld [vmem:[#allocation13 + $0x30] sm:$0xff]
    %v715 = vld [vmem:[#allocation13 + $0x38] sm:$0xff]
    %v716 = vld [vmem:[#allocation13 + $0x40] sm:$0xff]
    %v717 = vld [vmem:[#allocation13 + $0x48] sm:$0xff]
    %v718 = vld [vmem:[#allocation13 + $0x50] sm:$0xff]
    %v719 = vld [vmem:[#allocation13 + $0x58] sm:$0xff]
    %v720 = vld [vmem:[#allocation13 + $0x60] sm:$0xff]
    %v721 = vld [vmem:[#allocation13 + $0x68] sm:$0xff]
    %v722 = vld [vmem:[#allocation13 + $0x70] sm:$0xff]
    %v723 = vld [vmem:[#allocation13 + $0x78] sm:$0xff]
    %v724 = vld [vmem:[#allocation13 + $0x80] sm:$0xff]
    %v725 = vld [vmem:[#allocation13 + $0x88] sm:$0xff]
    %v726 = vld [vmem:[#allocation13 + $0x90] sm:$0xff]
    %v727 = vld [vmem:[#allocation13 + $0x98] sm:$0xff]
    %v728 = vld [vmem:[#allocation13 + $0xa0] sm:$0xff]
    %v729 = vld [vmem:[#allocation13 + $0xa8] sm:$0xff]
    %v730 = vld [vmem:[#allocation13 + $0xb0] sm:$0xff]
    %v731 = vld [vmem:[#allocation13 + $0xb8] sm:$0xff]
    %v732 = vld [vmem:[#allocation13 + $0xc0] sm:$0xff]
    %v733 = vld [vmem:[#allocation13 + $0xc8] sm:$0xff]
    %v734 = vld [vmem:[#allocation13 + $0xd0] sm:$0xff]
    %v735 = vld [vmem:[#allocation13 + $0xd8] sm:$0xff]
    %v736 = vld [vmem:[#allocation13 + $0xe0] sm:$0xff]
    %v737 = vld [vmem:[#allocation13 + $0xe8] sm:$0xff]
    %v738 = vld [vmem:[#allocation13 + $0xf0] sm:$0xff]
    %v739 = vld [vmem:[#allocation13 + $0xf8] sm:$0xff]
    %v740 = vld [vmem:[#allocation13 + $0x100] sm:$0xff]
    %v741 = vld [vmem:[#allocation13 + $0x108] sm:$0xff]
    %v742 = vld [vmem:[#allocation13 + $0x110] sm:$0xff]
    %v743 = vld [vmem:[#allocation13 + $0x118] sm:$0xff]
    %v744 = vld [vmem:[#allocation13 + $0x120] sm:$0xff]
    %v745 = vld [vmem:[#allocation13 + $0x128] sm:$0xff]
    %v746 = vld [vmem:[#allocation13 + $0x130] sm:$0xff]
    %v747 = vld [vmem:[#allocation13 + $0x138] sm:$0xff]
    %v748 = vld [vmem:[#allocation13 + $0x140] sm:$0xff]
    %v749 = vld [vmem:[#allocation13 + $0x148] sm:$0xff]
    %v750 = vld [vmem:[#allocation13 + $0x150] sm:$0xff]
    %v751 = vld [vmem:[#allocation13 + $0x158] sm:$0xff]
    %v752 = vld [vmem:[#allocation13 + $0x160] sm:$0xff]
    %v753 = vld [vmem:[#allocation13 + $0x168] sm:$0xff]
    %v754 = vld [vmem:[#allocation13 + $0x170] sm:$0xff]
    %v755 = vld [vmem:[#allocation13 + $0x178] sm:$0xff]
    %v756 = vld [vmem:[#allocation13 + $0x180] sm:$0xff]
    %v757 = vld [vmem:[#allocation13 + $0x188] sm:$0xff]
    %v758 = vld [vmem:[#allocation13 + $0x190] sm:$0xff]
    %v759 = vld [vmem:[#allocation13 + $0x198] sm:$0xff]
    %v760 = vld [vmem:[#allocation13 + $0x1a0] sm:$0xff]
    %v761 = vld [vmem:[#allocation13 + $0x1a8] sm:$0xff]
    %v762 = vld [vmem:[#allocation13 + $0x1b0] sm:$0xff]
    %v763 = vld [vmem:[#allocation13 + $0x1b8] sm:$0xff]
    %v764 = vld [vmem:[#allocation13 + $0x1c0] sm:$0xff]
    %v765 = vld [vmem:[#allocation13 + $0x1c8] sm:$0xff]
    %v766 = vld [vmem:[#allocation13 + $0x1d0] sm:$0xff]
    %v767 = vld [vmem:[#allocation13 + $0x1d8] sm:$0xff]
    %v768 = vld [vmem:[#allocation13 + $0x1e0] sm:$0xff]
    %v769 = vld [vmem:[#allocation13 + $0x1e8] sm:$0xff]
    %v770 = vld [vmem:[#allocation13 + $0x1f0] sm:$0xff]
    %v771 = vld [vmem:[#allocation13 + $0x1f8] sm:$0xff]
    %772 = vmatprep.subr.mxu0 %v709
    %773 = vmatpush1.msra.mxu0 %v708
    %774 = vmatprep.subr.mxu0 %v713
    %775 = vmatpush1.msra.mxu0 %v712
    %776 = vmatprep.subr.mxu0 %v717
    %777 = vmatpush1.msra.mxu0 %v716
    %778 = vmatprep.subr.mxu0 %v721
    %779 = vmatpush1.msra.mxu0 %v720
    %780 = vmatprep.subr.mxu0 %v725
    %781 = vmatpush1.msra.mxu0 %v724
    %782 = vmatprep.subr.mxu0 %v729
    %783 = vmatpush1.msra.mxu0 %v728
    %784 = vmatprep.subr.mxu0 %v733
    %785 = vmatpush1.msra.mxu0 %v732
    %786 = vmatprep.subr.mxu0 %v737
    %787 = vmatpush1.msra.mxu0 %v736
    %788 = vmatprep.subr.mxu0 %v741
    %789 = vmatpush1.msra.mxu0 %v740
    %790 = vmatprep.subr.mxu0 %v745
    %791 = vmatpush1.msra.mxu0 %v744
    %792 = vmatprep.subr.mxu0 %v749
    %793 = vmatpush1.msra.mxu0 %v748
    %794 = vmatprep.subr.mxu0 %v753
    %795 = vmatpush1.msra.mxu0 %v752
    %796 = vmatprep.subr.mxu0 %v757
    %797 = vmatpush1.msra.mxu0 %v756
    %798 = vmatprep.subr.mxu0 %v761
    %799 = vmatpush1.msra.mxu0 %v760
    %800 = vmatprep.subr.mxu0 %v765
    %801 = vmatpush1.msra.mxu0 %v764
    %802 = vmatprep.subr.mxu0 %v769
    %803 = vmatpush1.msra.mxu0 %v768
    %804 = vmatprep.subr.mxu0 0.0
    %805 = vmatpush1.msra.mxu0 0.0
    %806 = vmatprep.subr.mxu0 0.0
    %807 = vmatpush1.msra.mxu0 0.0
    %808 = vmatprep.subr.mxu0 0.0
    %809 = vmatpush1.msra.mxu0 0.0
    %810 = vmatprep.subr.mxu0 0.0
    %811 = vmatpush1.msra.mxu0 0.0
    %812 = vmatprep.subr.mxu0 0.0
    %813 = vmatpush1.msra.mxu0 0.0
    %814 = vmatprep.subr.mxu0 0.0
    %815 = vmatpush1.msra.mxu0 0.0
    %816 = vmatprep.subr.mxu0 0.0
    %817 = vmatpush1.msra.mxu0 0.0
    %818 = vmatprep.subr.mxu0 0.0
    %819 = vmatpush1.msra.mxu0 0.0
    %820 = vmatprep.subr.mxu0 0.0
    %821 = vmatpush1.msra.mxu0 0.0
    %822 = vmatprep.subr.mxu0 0.0
    %823 = vmatpush1.msra.mxu0 0.0
    %824 = vmatprep.subr.mxu0 0.0
    %825 = vmatpush1.msra.mxu0 0.0
    %826 = vmatprep.subr.mxu0 0.0
    %827 = vmatpush1.msra.mxu0 0.0
    %828 = vmatprep.subr.mxu0 0.0
    %829 = vmatpush1.msra.mxu0 0.0
    %830 = vmatprep.subr.mxu0 0.0
    %831 = vmatpush1.msra.mxu0 0.0
    %832 = vmatprep.subr.mxu0 0.0
    %833 = vmatpush1.msra.mxu0 0.0
    %834 = vmatprep.subr.mxu0 0.0
    %835 = vmatpush1.msra.mxu0 0.0
    %836 = vmatprep.mubr.f32.mxu0 0.0
    %837 = vmatmul.mubr.f32.gmra.mrb[0].mxu0 %v186
    %v838 = vpop.f32.mrb[0].mxu0
    %v839 = vadd.f32 0.0, %v838
    %v840 = vpop.f32.mrb[0].mxu0
    %v841 = vadd.f32 0.0, %v840
    %842 = vdwg.mxu0
    %843 = vmatprep.subr.mxu0 %v711
    %844 = vmatpush1.msra.mxu0 %v710
    %845 = vmatprep.subr.mxu0 %v715
    %846 = vmatpush1.msra.mxu0 %v714
    %847 = vmatprep.subr.mxu0 %v719
    %848 = vmatpush1.msra.mxu0 %v718
    %849 = vmatprep.subr.mxu0 %v723
    %850 = vmatpush1.msra.mxu0 %v722
    %851 = vmatprep.subr.mxu0 %v727
    %852 = vmatpush1.msra.mxu0 %v726
    %853 = vmatprep.subr.mxu0 %v731
    %854 = vmatpush1.msra.mxu0 %v730
    %855 = vmatprep.subr.mxu0 %v735
    %856 = vmatpush1.msra.mxu0 %v734
    %857 = vmatprep.subr.mxu0 %v739
    %858 = vmatpush1.msra.mxu0 %v738
    %859 = vmatprep.subr.mxu0 %v743
    %860 = vmatpush1.msra.mxu0 %v742
    %861 = vmatprep.subr.mxu0 %v747
    %862 = vmatpush1.msra.mxu0 %v746
    %863 = vmatprep.subr.mxu0 %v751
    %864 = vmatpush1.msra.mxu0 %v750
    %865 = vmatprep.subr.mxu0 %v755
    %866 = vmatpush1.msra.mxu0 %v754
    %867 = vmatprep.subr.mxu0 %v759
    %868 = vmatpush1.msra.mxu0 %v758
    %869 = vmatprep.subr.mxu0 %v763
    %870 = vmatpush1.msra.mxu0 %v762
    %871 = vmatprep.subr.mxu0 %v767
    %872 = vmatpush1.msra.mxu0 %v766
    %873 = vmatprep.subr.mxu0 %v771
    %874 = vmatpush1.msra.mxu0 %v770
    %875 = vmatprep.subr.mxu0 0.0
    %876 = vmatpush1.msra.mxu0 0.0
    %877 = vmatprep.subr.mxu0 0.0
    %878 = vmatpush1.msra.mxu0 0.0
    %879 = vmatprep.subr.mxu0 0.0
    %880 = vmatpush1.msra.mxu0 0.0
    %881 = vmatprep.subr.mxu0 0.0
    %882 = vmatpush1.msra.mxu0 0.0
    %883 = vmatprep.subr.mxu0 0.0
    %884 = vmatpush1.msra.mxu0 0.0
    %885 = vmatprep.subr.mxu0 0.0
    %886 = vmatpush1.msra.mxu0 0.0
    %887 = vmatprep.subr.mxu0 0.0
    %888 = vmatpush1.msra.mxu0 0.0
    %889 = vmatprep.subr.mxu0 0.0
    %890 = vmatpush1.msra.mxu0 0.0
    %891 = vmatprep.subr.mxu0 0.0
    %892 = vmatpush1.msra.mxu0 0.0
    %893 = vmatprep.subr.mxu0 0.0
    %894 = vmatpush1.msra.mxu0 0.0
    %895 = vmatprep.subr.mxu0 0.0
    %896 = vmatpush1.msra.mxu0 0.0
    %897 = vmatprep.subr.mxu0 0.0
    %898 = vmatpush1.msra.mxu0 0.0
    %899 = vmatprep.subr.mxu0 0.0
    %900 = vmatpush1.msra.mxu0 0.0
    %901 = vmatprep.subr.mxu0 0.0
    %902 = vmatpush1.msra.mxu0 0.0
    %903 = vmatprep.subr.mxu0 0.0
    %904 = vmatpush1.msra.mxu0 0.0
    %905 = vmatprep.subr.mxu0 0.0
    %906 = vmatpush1.msra.mxu0 0.0
    %907 = vmatprep.mubr.f32.mxu0 0.0
    %908 = vmatmul.mubr.f32.gmra.mrb[0].mxu0 %v186
    %v909 = vpop.f32.mrb[0].mxu0
    %v910 = vadd.f32 0.0, %v909
    %v911 = vpop.f32.mrb[0].mxu0
    %v912 = vadd.f32 0.0, %v911
    %913 = vdwg.mxu0
    %914 = vmatprep.subr.mxu0 %v645
    %915 = vmatpush1.msra.mxu0 %v644
    %916 = vmatprep.subr.mxu0 %v649
    %917 = vmatpush1.msra.mxu0 %v648
    %918 = vmatprep.subr.mxu0 %v653
    %919 = vmatpush1.msra.mxu0 %v652
    %920 = vmatprep.subr.mxu0 %v657
    %921 = vmatpush1.msra.mxu0 %v656
    %922 = vmatprep.subr.mxu0 %v661
    %923 = vmatpush1.msra.mxu0 %v660
    %924 = vmatprep.subr.mxu0 %v665
    %925 = vmatpush1.msra.mxu0 %v664
    %926 = vmatprep.subr.mxu0 %v669
    %927 = vmatpush1.msra.mxu0 %v668
    %928 = vmatprep.subr.mxu0 %v673
    %929 = vmatpush1.msra.mxu0 %v672
    %930 = vmatprep.subr.mxu0 %v677
    %931 = vmatpush1.msra.mxu0 %v676
    %932 = vmatprep.subr.mxu0 %v681
    %933 = vmatpush1.msra.mxu0 %v680
    %934 = vmatprep.subr.mxu0 %v685
    %935 = vmatpush1.msra.mxu0 %v684
    %936 = vmatprep.subr.mxu0 %v689
    %937 = vmatpush1.msra.mxu0 %v688
    %938 = vmatprep.subr.mxu0 %v693
    %939 = vmatpush1.msra.mxu0 %v692
    %940 = vmatprep.subr.mxu0 %v697
    %941 = vmatpush1.msra.mxu0 %v696
    %942 = vmatprep.subr.mxu0 %v701
    %943 = vmatpush1.msra.mxu0 %v700
    %944 = vmatprep.subr.mxu0 %v705
    %945 = vmatpush1.msra.mxu0 %v704
    %946 = vmatprep.subr.mxu0 0.0
    %947 = vmatpush1.msra.mxu0 0.0
    %948 = vmatprep.subr.mxu0 0.0
    %949 = vmatpush1.msra.mxu0 0.0
    %950 = vmatprep.subr.mxu0 0.0
    %951 = vmatpush1.msra.mxu0 0.0
    %952 = vmatprep.subr.mxu0 0.0
    %953 = vmatpush1.msra.mxu0 0.0
    %954 = vmatprep.subr.mxu0 0.0
    %955 = vmatpush1.msra.mxu0 0.0
    %956 = vmatprep.subr.mxu0 0.0
    %957 = vmatpush1.msra.mxu0 0.0
    %958 = vmatprep.subr.mxu0 0.0
    %959 = vmatpush1.msra.mxu0 0.0
    %960 = vmatprep.subr.mxu0 0.0
    %961 = vmatpush1.msra.mxu0 0.0
    %962 = vmatprep.subr.mxu0 0.0
    %963 = vmatpush1.msra.mxu0 0.0
    %964 = vmatprep.subr.mxu0 0.0
    %965 = vmatpush1.msra.mxu0 0.0
    %966 = vmatprep.subr.mxu0 0.0
    %967 = vmatpush1.msra.mxu0 0.0
    %968 = vmatprep.subr.mxu0 0.0
    %969 = vmatpush1.msra.mxu0 0.0
    %970 = vmatprep.subr.mxu0 0.0
    %971 = vmatpush1.msra.mxu0 0.0
    %972 = vmatprep.subr.mxu0 0.0
    %973 = vmatpush1.msra.mxu0 0.0
    %974 = vmatprep.subr.mxu0 0.0
    %975 = vmatpush1.msra.mxu0 0.0
    %976 = vmatprep.subr.mxu0 0.0
    %977 = vmatpush1.msra.mxu0 0.0
    %978 = vmatprep.mubr.f32.mxu0 0.0
    %979 = vmatmul.mubr.f32.gmra.mrb[0].mxu0 %v643
    %v980 = vpop.f32.mrb[0].mxu0
    %v981 = vadd.f32 %v839, %v980
    %v982 = vpop.f32.mrb[0].mxu0
    %v983 = vadd.f32 %v841, %v982
    %984 = vdwg.mxu0
    %985 = vmatprep.subr.mxu0 %v647
    %986 = vmatpush1.msra.mxu0 %v646
    %987 = vmatprep.subr.mxu0 %v651
    %988 = vmatpush1.msra.mxu0 %v650
    %989 = vmatprep.subr.mxu0 %v655
    %990 = vmatpush1.msra.mxu0 %v654
    %991 = vmatprep.subr.mxu0 %v659
    %992 = vmatpush1.msra.mxu0 %v658
    %993 = vmatprep.subr.mxu0 %v663
    %994 = vmatpush1.msra.mxu0 %v662
    %995 = vmatprep.subr.mxu0 %v667
    %996 = vmatpush1.msra.mxu0 %v666
    %997 = vmatprep.subr.mxu0 %v671
    %998 = vmatpush1.msra.mxu0 %v670
    %999 = vmatprep.subr.mxu0 %v675
    %1000 = vmatpush1.msra.mxu0 %v674
    %1001 = vmatprep.subr.mxu0 %v679
    %1002 = vmatpush1.msra.mxu0 %v678
    %1003 = vmatprep.subr.mxu0 %v683
    %1004 = vmatpush1.msra.mxu0 %v682
    %1005 = vmatprep.subr.mxu0 %v687
    %1006 = vmatpush1.msra.mxu0 %v686
    %1007 = vmatprep.subr.mxu0 %v691
    %1008 = vmatpush1.msra.mxu0 %v690
    %1009 = vmatprep.subr.mxu0 %v695
    %1010 = vmatpush1.msra.mxu0 %v694
    %1011 = vmatprep.subr.mxu0 %v699
    %1012 = vmatpush1.msra.mxu0 %v698
    %1013 = vmatprep.subr.mxu0 %v703
    %1014 = vmatpush1.msra.mxu0 %v702
    %1015 = vmatprep.subr.mxu0 %v707
    %1016 = vmatpush1.msra.mxu0 %v706
    %1017 = vmatprep.subr.mxu0 0.0
    %1018 = vmatpush1.msra.mxu0 0.0
    %1019 = vmatprep.subr.mxu0 0.0
    %1020 = vmatpush1.msra.mxu0 0.0
    %1021 = vmatprep.subr.mxu0 0.0
    %1022 = vmatpush1.msra.mxu0 0.0
    %1023 = vmatprep.subr.mxu0 0.0
    %1024 = vmatpush1.msra.mxu0 0.0
    %1025 = vmatprep.subr.mxu0 0.0
    %1026 = vmatpush1.msra.mxu0 0.0
    %1027 = vmatprep.subr.mxu0 0.0
    %1028 = vmatpush1.msra.mxu0 0.0
    %1029 = vmatprep.subr.mxu0 0.0
    %1030 = vmatpush1.msra.mxu0 0.0
    %1031 = vmatprep.subr.mxu0 0.0
    %1032 = vmatpush1.msra.mxu0 0.0
    %1033 = vmatprep.subr.mxu0 0.0
    %1034 = vmatpush1.msra.mxu0 0.0
    %1035 = vmatprep.subr.mxu0 0.0
    %1036 = vmatpush1.msra.mxu0 0.0
    %1037 = vmatprep.subr.mxu0 0.0
    %1038 = vmatpush1.msra.mxu0 0.0
    %1039 = vmatprep.subr.mxu0 0.0
    %1040 = vmatpush1.msra.mxu0 0.0
    %1041 = vmatprep.subr.mxu0 0.0
    %1042 = vmatpush1.msra.mxu0 0.0
    %1043 = vmatprep.subr.mxu0 0.0
    %1044 = vmatpush1.msra.mxu0 0.0
    %1045 = vmatprep.subr.mxu0 0.0
    %1046 = vmatpush1.msra.mxu0 0.0
    %1047 = vmatprep.subr.mxu0 0.0
    %1048 = vmatpush1.msra.mxu0 0.0
    %1049 = vmatprep.mubr.f32.mxu0 0.0
    %1050 = vmatmul.mubr.f32.gmra.mrb[0].mxu0 %v643
    %v1051 = vpop.f32.mrb[0].mxu0
    %v1052 = vadd.f32 %v910, %v1051
    %v1053 = vpop.f32.mrb[0].mxu0
    %v1054 = vadd.f32 %v912, %v1053
    %1055 = vdwg.mxu0
    %v1056 = vld [vmem:[%s13] sm:$0xf]
    %v1058 = vlaneseq
    %v1059 = vshrl.u32 %v1058, 7
    %v1060 = vsub.s32 0, %v1059
    %v1061 = vrot.slane %v1056, %v1060
    %v1062 = vlaneseq
    %v1063 = vshrl.u32 %v1062, 7
    %v1064 = vsub.s32 1, %v1063
    %v1065 = vrot.slane %v1056, %v1064
    %v1066 = vlaneseq
    %v1067 = vshrl.u32 %v1066, 7
    %v1068 = vsub.s32 2, %v1067
    %v1069 = vrot.slane %v1056, %v1068
    %v1070 = vlaneseq
    %v1071 = vshrl.u32 %v1070, 7
    %v1072 = vsub.s32 3, %v1071
    %v1073 = vrot.slane %v1056, %v1072
    %v1078 = vadd.f32 %v981, %v1061
    %v1079 = vadd.f32 %v983, %v1065
    %v1080 = vadd.f32 %v1052, %v1069
    %v1081 = vadd.f32 %v1054, %v1073
    %v1082 = vxor.u32 %v1078, 2147483648
    %v1083 = vmul.f32 %v1082, 1.442695
    %v1084 = vpow.pop %v1083
    %v1085 = vadd.f32 %v1084, 1.0
    %v1086 = vrcp.pop %v1085
    %v1087 = vmul.f32 1.0, %v1086
    %v1088 = vxor.u32 %v1079, 2147483648
    %v1089 = vmul.f32 %v1088, 1.442695
    %v1090 = vpow.pop %v1089
    %v1091 = vadd.f32 %v1090, 1.0
    %v1092 = vrcp.pop %v1091
    %v1093 = vmul.f32 1.0, %v1092
    %v1094 = vtanh.pop %v1080
    %v1095 = vxor.u32 %v1081, 2147483648
    %v1096 = vmul.f32 %v1095, 1.442695
    %v1097 = vpow.pop %v1096
    %v1098 = vadd.f32 %v1097, 1.0
    %v1099 = vrcp.pop %v1098
    %v1100 = vmul.f32 1.0, %v1099
    %v1101 = vmul.f32 %v1093, %v187
    %v1102 = vmul.f32 %v1087, %v1094
    %v1103 = vadd.f32 %v1101, %v1102
    %v1104 = vtanh.pop %v1103
    %v1105 = vmul.f32 %v1100, %v1104
    %1106 = vst [vmem:[%s17] sm:$0x1] %v1105
    %1107 = vst [vmem:[%s18] sm:$0x1] %v1103
    %v1108 = vld [vmem:[#allocation14] sm:$0xff]
    %v1109 = vld [vmem:[#allocation14 + $0x8] sm:$0xff]
    %v1110 = vld [vmem:[#allocation14 + $0x10] sm:$0xff]
    %v1111 = vld [vmem:[#allocation14 + $0x18] sm:$0xff]
    %v1112 = vld [vmem:[#allocation14 + $0x20] sm:$0xff]
    %v1113 = vld [vmem:[#allocation14 + $0x28] sm:$0xff]
    %v1114 = vld [vmem:[#allocation14 + $0x30] sm:$0xff]
    %v1115 = vld [vmem:[#allocation14 + $0x38] sm:$0xff]
    %v1116 = vld [vmem:[#allocation14 + $0x40] sm:$0xff]
    %v1117 = vld [vmem:[#allocation14 + $0x48] sm:$0xff]
    %v1118 = vld [vmem:[#allocation14 + $0x50] sm:$0xff]
    %v1119 = vld [vmem:[#allocation14 + $0x58] sm:$0xff]
    %v1120 = vld [vmem:[#allocation14 + $0x60] sm:$0xff]
    %v1121 = vld [vmem:[#allocation14 + $0x68] sm:$0xff]
    %v1122 = vld [vmem:[#allocation14 + $0x70] sm:$0xff]
    %v1123 = vld [vmem:[#allocation14 + $0x78] sm:$0xff]
    %v1124 = vld [vmem:[%s15] sm:$0x1]
    %1125 = vmatprep.subr.mxu0 0.0
    %1126 = vmatpush1.msra.mxu0 %v1108
    %1127 = vmatprep.subr.mxu0 0.0
    %1128 = vmatpush1.msra.mxu0 %v1109
    %1129 = vmatprep.subr.mxu0 0.0
    %1130 = vmatpush1.msra.mxu0 %v1110
    %1131 = vmatprep.subr.mxu0 0.0
    %1132 = vmatpush1.msra.mxu0 %v1111
    %1133 = vmatprep.subr.mxu0 0.0
    %1134 = vmatpush1.msra.mxu0 %v1112
    %1135 = vmatprep.subr.mxu0 0.0
    %1136 = vmatpush1.msra.mxu0 %v1113
    %1137 = vmatprep.subr.mxu0 0.0
    %1138 = vmatpush1.msra.mxu0 %v1114
    %1139 = vmatprep.subr.mxu0 0.0
    %1140 = vmatpush1.msra.mxu0 %v1115
    %1141 = vmatprep.subr.mxu0 0.0
    %1142 = vmatpush1.msra.mxu0 %v1116
    %1143 = vmatprep.subr.mxu0 0.0
    %1144 = vmatpush1.msra.mxu0 %v1117
    %1145 = vmatprep.subr.mxu0 0.0
    %1146 = vmatpush1.msra.mxu0 %v1118
    %1147 = vmatprep.subr.mxu0 0.0
    %1148 = vmatpush1.msra.mxu0 %v1119
    %1149 = vmatprep.subr.mxu0 0.0
    %1150 = vmatpush1.msra.mxu0 %v1120
    %1151 = vmatprep.subr.mxu0 0.0
    %1152 = vmatpush1.msra.mxu0 %v1121
    %1153 = vmatprep.subr.mxu0 0.0
    %1154 = vmatpush1.msra.mxu0 %v1122
    %1155 = vmatprep.subr.mxu0 0.0
    %1156 = vmatpush1.msra.mxu0 %v1123
    %1157 = vmatprep.subr.mxu0 0.0
    %1158 = vmatpush1.msra.mxu0 0.0
    %1159 = vmatprep.subr.mxu0 0.0
    %1160 = vmatpush1.msra.mxu0 0.0
    %1161 = vmatprep.subr.mxu0 0.0
    %1162 = vmatpush1.msra.mxu0 0.0
    %1163 = vmatprep.subr.mxu0 0.0
    %1164 = vmatpush1.msra.mxu0 0.0
    %1165 = vmatprep.subr.mxu0 0.0
    %1166 = vmatpush1.msra.mxu0 0.0
    %1167 = vmatprep.subr.mxu0 0.0
    %1168 = vmatpush1.msra.mxu0 0.0
    %1169 = vmatprep.subr.mxu0 0.0
    %1170 = vmatpush1.msra.mxu0 0.0
    %1171 = vmatprep.subr.mxu0 0.0
    %1172 = vmatpush1.msra.mxu0 0.0
    %1173 = vmatprep.subr.mxu0 0.0
    %1174 = vmatpush1.msra.mxu0 0.0
    %1175 = vmatprep.subr.mxu0 0.0
    %1176 = vmatpush1.msra.mxu0 0.0
    %1177 = vmatprep.subr.mxu0 0.0
    %1178 = vmatpush1.msra.mxu0 0.0
    %1179 = vmatprep.subr.mxu0 0.0
    %1180 = vmatpush1.msra.mxu0 0.0
    %1181 = vmatprep.subr.mxu0 0.0
    %1182 = vmatpush1.msra.mxu0 0.0
    %1183 = vmatprep.subr.mxu0 0.0
    %1184 = vmatpush1.msra.mxu0 0.0
    %1185 = vmatprep.subr.mxu0 0.0
    %1186 = vmatpush1.msra.mxu0 0.0
    %1187 = vmatprep.subr.mxu0 0.0
    %1188 = vmatpush1.msra.mxu0 0.0
    %1189 = vmatprep.mubr.f32.mxu0 0.0
    %1190 = vmatmul.mubr.f32.gmra.mrb[0].mxu0 %v1105
    %v1191 = vpop.f32.mrb[0].mxu0
    %v1192 = vadd.f32 %v1124, %v1191
    %v1193 = vpop.f32.mrb[0].mxu0
    %1194 = vdwg.mxu0
    %vm1195 = vcmp.lt.s32.totalorder %v367, 40
    %v1196 = vsel %vm1195, %v1192, -1e+30
    %v1197 = vsel %vm370, %v1196, -inf
    %1198 = vmax.xlane.f32.xlu0 %v1197
    %v1199 = vpop.xlane.xlu0 %1198
    %v1200 = vsub.f32 %v1196, %v1199
    %v1201 = vmul.f32 %v1200, 1.442695
    %v1202 = vpow.pop %v1201
    %v1203 = vsel %vm370, %v1202, 0.0
    %1204 = vadd.xlane.f32.xlu0 %v1203
    %v1205 = vpop.xlane.xlu0 %1204
    %v1206 = vlog2.pop %v1205
    %v1207 = vmul.f32 %v1206, 0.6931472
    %v1208 = vadd.f32 %v1199, %v1207
    %v1209 = vsub.f32 %v1196, %v1208
    %1210 = vst [vmem:[#allocation16] sm:$0x1] %v1209
    // Predicated region
    $region116: #{attn_decoder_forward.1} parent=1 // pred_check
      _
    $region117: #{attn_decoder_forward.1} parent=1 // pred_check_branch
      %1212 = sbr.rel (0) target = $region119
    $region118: #{attn_decoder_forward.1} parent=1 // pred_region
      %s1214 = ssub.s32 16, 16
      %1215 = vsyncadd [#allocation7], %s1214
      %s1217 = sshll.u32 [#allocation16], 4
      %s1218 = int_to_ptr.vmem [resolvable:$true] %s1217
      %1220 = dma.vmem_to_hbm [thread:$0]  %s1218, 16, %s16, [#allocation7]
    $region119: #{attn_decoder_forward.1} parent=1 // pred_fallthru
      _
    // Predicated region
    $region120: #{attn_decoder_forward.1} parent=1 // pred_check
      _
    $region121: #{attn_decoder_forward.1} parent=1 // pred_check_branch
      %1222 = sbr.rel (0) target = $region123
    $region122: #{attn_decoder_forward.1} parent=1 // pred_region
      _
    $region123: #{attn_decoder_forward.1} parent=1 // pred_fallthru
      _
    // Predicated region
    $region124: #{attn_decoder_forward.1} parent=1 // pred_check
      _
    $region125: #{attn_decoder_forward.1} parent=1 // pred_check_branch
      %1224 = sbr.rel (0) target = $region127
    $region126: #{attn_decoder_forward.1} parent=1 // pred_region
      _
    $region127: #{attn_decoder_forward.1} parent=1 // pred_fallthru
      _
    // Predicated region
    $region128: #{attn_decoder_forward.1} parent=1 // pred_check
      _
    $region129: #{attn_decoder_forward.1} parent=1 // pred_check_branch
      %1226 = sbr.rel (0) target = $region131
    $region130: #{attn_decoder_forward.1} parent=1 // pred_region
      %s1228 = ssub.s32 16, 16
      %1229 = vsyncadd [#allocation18], %s1228
      %s1231 = sshll.u32 [#allocation17], 4
      %s1232 = int_to_ptr.vmem [resolvable:$true] %s1231
      %1234 = dma.vmem_to_hbm [thread:$0]  %s1232, 16, %s19, [#allocation18]
    $region131: #{attn_decoder_forward.1} parent=1 // pred_fallthru
      _
    // Predicated region
    $region132: #{attn_decoder_forward.1} parent=1 // pred_check
      _
    $region133: #{attn_decoder_forward.1} parent=1 // pred_check_branch
      %1236 = sbr.rel (0) target = $region135
    $region134: #{attn_decoder_forward.1} parent=1 // pred_region
      %1237 = dma.done [#allocation7], 16
    $region135: #{attn_decoder_forward.1} parent=1 // pred_fallthru
      _
    // Predicated region
    $region136: #{attn_decoder_forward.1} parent=1 // pred_check
      _
    $region137: #{attn_decoder_forward.1} parent=1 // pred_check_branch
      %1239 = sbr.rel (0) target = $region139
    $region138: #{attn_decoder_forward.1} parent=1 // pred_region
      _
    $region139: #{attn_decoder_forward.1} parent=1 // pred_fallthru
      _
    // Predicated region
    $region140: #{attn_decoder_forward.1} parent=1 // pred_check
      _
    $region141: #{attn_decoder_forward.1} parent=1 // pred_check_branch
      %1241 = sbr.rel (0) target = $region143
    $region142: #{attn_decoder_forward.1} parent=1 // pred_region
      _
    $region143: #{attn_decoder_forward.1} parent=1 // pred_fallthru
      _
    // Predicated region
    $region144: #{attn_decoder_forward.1} parent=1 // pred_check
      _
    $region145: #{attn_decoder_forward.1} parent=1 // pred_check_branch
      %1243 = sbr.rel (0) target = $region147
    $region146: #{attn_decoder_forward.1} parent=1 // pred_region
      %1244 = dma.done [#allocation18], 16
    $region147: #{attn_decoder_forward.1} parent=1 // pred_fallthru
      _
    %1245 = vsyncpa [#allocation6], 1
    %1246 = vsyncpa [#allocation9], 1
    %1247 = vsyncpa [#allocation12], 1
    %1248 = vsyncpa [#allocation15], 1
    %1249 = vsyncpa [#allocation7], 1
    %1250 = vsyncpa [#allocation18], 1
  %1251 = vsyncmov [#allocation3]
  %s1252 = vpop.sfrf %1251
  %p1253 = scmp.eq.s32.totalorder %s1252, 0
  %p1254 = pneg %p1253
  %1256 = shalt.err (%p1254)

</llo_original>
